<compile_context>
chip_gen: v5e
topology: v5e:2x2
jax: 0.10.0
libtpu: 0.0.40
codegen_flags: <defaults>
</compile_context>

<pallas_src>
import functools

import jax
import jax.numpy as jnp
from jax.experimental import pallas as pl
from jax.experimental.pallas import tpu as pltpu


def _round_up(x, m):
    return (x + m - 1) // m * m


def _conv_bn_silu_kernel(x_ref, w_ref, b_ref, o_ref, *, K, Wp, THWp):
    """One (branch, batch, h-tile) grid step.

    x_ref: (1, 1, 1, TWin*Wp, C1)  zero-padded input tile, H and W flattened
    w_ref: (1, K*K, C1, C2p)       BN-scale-folded weights, one (C1,C2p) slab/tap
    b_ref: (1, 1, C2p)             folded BN bias
    o_ref: (1, 1, 1, TH*Wp, C2p)   conv+BN+SiLU output (halo columns included,
                                   stripped by the caller; lane-dense stores)
    """
    flat = x_ref[0, 0, 0]                       # (TWin*Wp, C1)

    # K independent accumulator chains (one per tap-row dy) so MXU result pops
    # and the dependent VPU adds can overlap; summed once at the end.
    row_accs = []
    for dy in range(K):
        acc = None
        for dx in range(K):
            off = dy * Wp + dx                  # contiguous row window, no reshape
            tap = flat[off:off + THWp, :]       # (TH*Wp, C1)
            part = jnp.dot(tap, w_ref[0, dy * K + dx],
                           preferred_element_type=jnp.float32)
            acc = part if acc is None else acc + part
        row_accs.append(acc)
    acc = functools.reduce(lambda a, b: a + b, row_accs)    # (TH*Wp, C2p) f32

    acc = acc + b_ref[0]                        # folded BatchNorm bias (eval)
    out = acc * jax.nn.sigmoid(acc)             # SiLU
    o_ref[0, 0, 0] = out.astype(o_ref.dtype)


def _pick_h_tile(H, Wp, C2p, out_bytes, budget_bytes=4 << 20):
    """Largest divisor of H whose output block stays under budget_bytes."""
    max_th = max(1, budget_bytes // (Wp * C2p * out_bytes))
    best = 1
    for th in range(1, H + 1):
        if H % th == 0 and th <= max_th:
            best = th
    return best


def focus_h(x_nchw, w1, s1, b1, w2, s2, b2, *, h_tile=None, compute_dtype=None):
    """FocusH forward. x_nchw: (B, C1, H, W), W even. Returns (B, C2, H, W)."""
    B, C1, H, W = x_nchw.shape
    K = w1.shape[0]
    C2 = w1.shape[-1]
    assert W % 2 == 0 and K % 2 == 1
    pad = K // 2
    Wh = W // 2
    Wp = Wh + 2 * pad                       # padded half-width
    C2p = _round_up(C2, 128)                # lane-dense output channels
    dt = x_nchw.dtype if compute_dtype is None else jnp.dtype(compute_dtype)
    out_dt = x_nchw.dtype

    TH = h_tile if h_tile is not None else _pick_h_tile(
        H, Wp, C2p, jnp.dtype(out_dt).itemsize)
    assert H % TH == 0
    nH = H // TH
    TWin = TH + 2 * pad + 1                 # +1 extra zero row for flat-tap overrun
    THWp = TH * Wp

    # ---- checkerboard de-interleave (strided slices + select; no scatters) ----
    xe = x_nchw[..., 0::2]                  # (B, C1, H, Wh)  even source columns
    xo = x_nchw[..., 1::2]                  #                 odd  source columns
    h_even = (jnp.arange(H) % 2 == 0)[None, None, :, None]
    x1 = jnp.where(h_even, xe, xo)          # branch 1 half-image
    x2 = jnp.where(h_even, xo, xe)          # branch 2 half-image
    xb = jnp.stack([x1, x2], axis=0)                        # (2, B, C1, H, Wh)
    xb = jnp.transpose(xb, (0, 1, 3, 4, 2))                 # (2, B, H, Wh, C1)

    # zero halo + per-H-tile windows + flattened (rows, C1) layout, all fused by XLA
    Hp = H + 2 * pad + 1
    xp = jnp.zeros((2, B, Hp, Wp, C1), dt)
    xp = xp.at[:, :, pad:pad + H, pad:pad + Wh, :].set(xb.astype(dt))
    if nH == 1:
        xt = xp[:, :, None]                                 # (2, B, 1, TWin, Wp, C1)
    else:
        xt = jnp.stack([xp[:, :, ht * TH: ht * TH + TWin]
                        for ht in range(nH)], axis=2)       # (2, B, nH, TWin, Wp, C1)
    xt = xt.reshape(2, B, nH, TWin * Wp, C1)

    # ---- weights: fold BN scale, per-tap slabs, pad C2 -> C2p ----
    def prep_w(w, s):
        wf = (w * s[None, None, None, :]).reshape(K * K, C1, C2)
        return jnp.pad(wf, ((0, 0), (0, 0), (0, C2p - C2))).astype(dt)

    wmat = jnp.stack([prep_w(w1, s1), prep_w(w2, s2)], axis=0)   # (2, K*K, C1, C2p)
    bias = jnp.stack([b1, b2], axis=0)
    bias = jnp.pad(bias, ((0, 0), (0, C2p - C2)))
    bias = bias.reshape(2, 1, C2p).astype(jnp.float32)

    # ---- fused pallas_call over (branch, batch, h-tile) ----
    kernel = functools.partial(_conv_bn_silu_kernel, K=K, Wp=Wp, THWp=THWp)

    esz = jnp.dtype(dt).itemsize
    blk_bytes = (TWin * Wp * C1 * esz                         # input tile
                 + THWp * C2p * jnp.dtype(out_dt).itemsize    # output tile
                 + K * K * C1 * C2p * esz                     # weights
                 + C2p * 4)                                   # bias
    vmem_limit = int(max(8 << 20, min(100 << 20, 2 * blk_bytes + (4 << 20))))

    out = pl.pallas_call(
        kernel,
        out_shape=jax.ShapeDtypeStruct((2, B, nH, THWp, C2p), out_dt),
        grid=(2, B, nH),
        in_specs=[
            pl.BlockSpec((1, 1, 1, TWin * Wp, C1),
                         lambda br, b, ht: (br, b, ht, 0, 0)),
            pl.BlockSpec((1, K * K, C1, C2p),
                         lambda br, b, ht: (br, 0, 0, 0)),
            pl.BlockSpec((1, 1, C2p),
                         lambda br, b, ht: (br, 0, 0)),
        ],
        out_specs=pl.BlockSpec((1, 1, 1, THWp, C2p),
                               lambda br, b, ht: (br, b, ht, 0, 0)),
        compiler_params=pltpu.CompilerParams(
            dimension_semantics=("parallel", "parallel", "parallel"),
            vmem_limit_bytes=vmem_limit),
    )(xt, wmat, bias)

    # strip halo columns + channel padding (fuses into the gather below)
    y = out.reshape(2, B, H, Wp, C2p)[:, :, :, :Wh, :C2]     # (2, B, H, Wh, C2)
    y1, y2 = y[0], y[1]

    # ---- checkerboard re-interleave back to full width, NCHW ----
    h_even4 = (jnp.arange(H) % 2 == 0)[None, :, None, None]
    even_w = jnp.where(h_even4, y1, y2)     # values landing at even output w
    odd_w = jnp.where(h_even4, y2, y1)      # values landing at odd  output w
    res = jnp.stack([even_w, odd_w], axis=3).reshape(B, H, W, C2)
    return jnp.transpose(res, (0, 3, 1, 2))


def _reference_focus_h(x_nchw, w1, s1, b1, w2, s2, b2):
    """Pure-JAX reference (lax conv) for correctness checking."""
    def conv_branch(xh, w, s, bvec):
        w_oihw = jnp.transpose(w, (3, 2, 0, 1))
        y = jax.lax.conv_general_dilated(
            xh, w_oihw, window_strides=(1, 1), padding="SAME",
            dimension_numbers=("NCHW", "OIHW", "NCHW"))
        y = y * s[None, :, None, None] + bvec[None, :, None, None]
        return y * jax.nn.sigmoid(y)

    B, C1, H, W = x_nchw.shape
    C2 = w1.shape[-1]
    Wh = W // 2
    x1 = jnp.zeros((B, C1, H, Wh), x_nchw.dtype)
    x1 = x1.at[:, :, ::2, :].set(x_nchw[:, :, ::2, ::2])
    x1 = x1.at[:, :, 1::2, :].set(x_nchw[:, :, 1::2, 1::2])
    x2 = jnp.zeros((B, C1, H, Wh), x_nchw.dtype)
    x2 = x2.at[:, :, ::2, :].set(x_nchw[:, :, ::2, 1::2])
    x2 = x2.at[:, :, 1::2, :].set(x_nchw[:, :, 1::2, ::2])
    y1 = conv_branch(x1, w1, s1, b1)
    y2 = conv_branch(x2, w2, s2, b2)
    result = jnp.zeros((B, C2, H, W), x_nchw.dtype)
    result = result.at[:, :, ::2, ::2].set(y1[:, :, ::2, :])
    result = result.at[:, :, 1::2, 1::2].set(y1[:, :, 1::2, :])
    result = result.at[:, :, ::2, 1::2].set(y2[:, :, ::2, :])
    result = result.at[:, :, 1::2, ::2].set(y2[:, :, 1::2, :])
    return result


if __name__ == "__main__":
    B, C1, C2, H, W, K = 2, 4, 4, 16, 16, 3

    key = jax.random.PRNGKey(0)
    (kx, kw1, kw2, kg1, kb1, kg2, kb2, km1, kv1, km2, kv2) = jax.random.split(key, 11)

    x = jax.random.normal(kx, (B, C1, H, W), dtype=jnp.float32)

    # Conv2d weights (no bias), stored HWIO
    w1 = 0.1 * jax.random.normal(kw1, (K, K, C1, C2), dtype=jnp.float32)
    w2 = 0.1 * jax.random.normal(kw2, (K, K, C1, C2), dtype=jnp.float32)

    # BatchNorm (eval mode) params, folded into per-channel scale/bias
    eps = 1e-5
    gamma1 = 1.0 + 0.1 * jax.random.normal(kg1, (C2,), dtype=jnp.float32)
    beta1 = 0.1 * jax.random.normal(kb1, (C2,), dtype=jnp.float32)
    mean1 = 0.1 * jax.random.normal(km1, (C2,), dtype=jnp.float32)
    var1 = jnp.abs(1.0 + 0.1 * jax.random.normal(kv1, (C2,), dtype=jnp.float32))
    gamma2 = 1.0 + 0.1 * jax.random.normal(kg2, (C2,), dtype=jnp.float32)
    beta2 = 0.1 * jax.random.normal(kb2, (C2,), dtype=jnp.float32)
    mean2 = 0.1 * jax.random.normal(km2, (C2,), dtype=jnp.float32)
    var2 = jnp.abs(1.0 + 0.1 * jax.random.normal(kv2, (C2,), dtype=jnp.float32))

    s1 = gamma1 / jnp.sqrt(var1 + eps)
    b1 = beta1 - mean1 * s1
    s2 = gamma2 / jnp.sqrt(var2 + eps)
    b2 = beta2 - mean2 * s2

    ref = _reference_focus_h(x, w1, s1, b1, w2, s2, b2)

    # f32 MXU-operand path (auto H-tile -> whole image per step at this size)
    out = jax.block_until_ready(jax.jit(focus_h)(x, w1, s1, b1, w2, s2, b2))
    assert out.shape == (B, C2, H, W)
    assert jnp.allclose(out, ref, rtol=1e-5, atol=1e-4), float(
        jnp.max(jnp.abs(out - ref)))

    # explicit H-tiled path (exercises the v7x-VMEM-friendly tiling: 2 tiles of 8 rows)
    out_t = jax.block_until_ready(
        jax.jit(functools.partial(focus_h, h_tile=8))(x, w1, s1, b1, w2, s2, b2))
    assert jnp.allclose(out_t, ref, rtol=1e-5, atol=1e-4), float(
        jnp.max(jnp.abs(out_t - ref)))

    # bf16 MXU-operand path (f32 accumulate), accuracy-gated with loose tolerance
    out_bf = jax.block_until_ready(
        jax.jit(functools.partial(focus_h, compute_dtype=jnp.bfloat16))(
            x, w1, s1, b1, w2, s2, b2))
    assert jnp.allclose(out_bf, ref, rtol=5e-2, atol=5e-2), float(
        jnp.max(jnp.abs(out_bf - ref)))

    print("KERNEL_OK")
</pallas_src>

<mosaic_0001>
module attributes {stable_mosaic.version = 11 : i64} {
  func.func @_conv_bn_silu_kernel(%arg0: i32, %arg1: i32, %arg2: i32, %arg3: memref<1x1x1x190x4xf32, #tpu.memory_space<vmem>>, %arg4: memref<1x9x4x128xf32, #tpu.memory_space<vmem>>, %arg5: memref<1x1x128xf32, #tpu.memory_space<vmem>>, %arg6: memref<1x1x1x160x128xf32, #tpu.memory_space<vmem>>) attributes {dimension_semantics = [#tpu.dimension_semantics<parallel>, #tpu.dimension_semantics<parallel>, #tpu.dimension_semantics<parallel>], iteration_bounds = array<i64: 2, 2, 1>, scalar_prefetch = 0 : i64, scratch_operands = 0 : i64, tpu.core_type = #tpu.core_type<tc>, window_params = [{transform_indices = @transform_0, window_bounds = array<i64: 1, 1, 1, 190, 4>}, {transform_indices = @transform_1, window_bounds = array<i64: 1, 9, 4, 128>}, {transform_indices = @transform_2, window_bounds = array<i64: 1, 1, 128>}, {transform_indices = @transform_3, window_bounds = array<i64: 1, 1, 1, 160, 128>}]} {
    %c0 = arith.constant 0 : index
    %c0_0 = arith.constant 0 : index
    %c0_1 = arith.constant 0 : index
    %c0_2 = arith.constant 0 : index
    %c0_3 = arith.constant 0 : index
    %0 = vector.load %arg3[%c0, %c0_0, %c0_1, %c0_2, %c0_3] : memref<1x1x1x190x4xf32, #tpu.memory_space<vmem>>, vector<1x1x1x190x4xf32>
    %1 = vector.shape_cast %0 : vector<1x1x1x190x4xf32> to vector<190x4xf32>
    %2 = vector.extract_strided_slice %1 {offsets = [0, 0], sizes = [160, 4], strides = [1, 1]} : vector<190x4xf32> to vector<160x4xf32>
    %c0_4 = arith.constant 0 : index
    %c0_5 = arith.constant 0 : index
    %c0_6 = arith.constant 0 : index
    %c0_7 = arith.constant 0 : index
    %3 = vector.load %arg4[%c0_4, %c0_5, %c0_6, %c0_7] : memref<1x9x4x128xf32, #tpu.memory_space<vmem>>, vector<1x1x4x128xf32>
    %4 = vector.shape_cast %3 : vector<1x1x4x128xf32> to vector<4x128xf32>
    %cst = arith.constant dense<0.000000e+00> : vector<160x128xf32>
    %5 = tpu.matmul %2, %4, %cst {dimension_numbers = #tpu.dot_dimension_numbers<[1], [0], [0], [1], [0, 0, 1, 1], [], []>} : vector<160x4xf32>, vector<4x128xf32>, vector<160x128xf32> -> vector<160x128xf32>
    %6 = vector.extract_strided_slice %1 {offsets = [1, 0], sizes = [160, 4], strides = [1, 1]} : vector<190x4xf32> to vector<160x4xf32>
    %c0_8 = arith.constant 0 : index
    %c1 = arith.constant 1 : index
    %c0_9 = arith.constant 0 : index
    %c0_10 = arith.constant 0 : index
    %7 = vector.load %arg4[%c0_8, %c1, %c0_9, %c0_10] : memref<1x9x4x128xf32, #tpu.memory_space<vmem>>, vector<1x1x4x128xf32>
    %8 = vector.shape_cast %7 : vector<1x1x4x128xf32> to vector<4x128xf32>
    %cst_11 = arith.constant dense<0.000000e+00> : vector<160x128xf32>
    %9 = tpu.matmul %6, %8, %cst_11 {dimension_numbers = #tpu.dot_dimension_numbers<[1], [0], [0], [1], [0, 0, 1, 1], [], []>} : vector<160x4xf32>, vector<4x128xf32>, vector<160x128xf32> -> vector<160x128xf32>
    %10 = arith.addf %5, %9 : vector<160x128xf32>
    %11 = vector.extract_strided_slice %1 {offsets = [2, 0], sizes = [160, 4], strides = [1, 1]} : vector<190x4xf32> to vector<160x4xf32>
    %c0_12 = arith.constant 0 : index
    %c2 = arith.constant 2 : index
    %c0_13 = arith.constant 0 : index
    %c0_14 = arith.constant 0 : index
    %12 = vector.load %arg4[%c0_12, %c2, %c0_13, %c0_14] : memref<1x9x4x128xf32, #tpu.memory_space<vmem>>, vector<1x1x4x128xf32>
    %13 = vector.shape_cast %12 : vector<1x1x4x128xf32> to vector<4x128xf32>
    %cst_15 = arith.constant dense<0.000000e+00> : vector<160x128xf32>
    %14 = tpu.matmul %11, %13, %cst_15 {dimension_numbers = #tpu.dot_dimension_numbers<[1], [0], [0], [1], [0, 0, 1, 1], [], []>} : vector<160x4xf32>, vector<4x128xf32>, vector<160x128xf32> -> vector<160x128xf32>
    %15 = arith.addf %10, %14 : vector<160x128xf32>
    %16 = vector.extract_strided_slice %1 {offsets = [10, 0], sizes = [160, 4], strides = [1, 1]} : vector<190x4xf32> to vector<160x4xf32>
    %c0_16 = arith.constant 0 : index
    %c3 = arith.constant 3 : index
    %c0_17 = arith.constant 0 : index
    %c0_18 = arith.constant 0 : index
    %17 = vector.load %arg4[%c0_16, %c3, %c0_17, %c0_18] : memref<1x9x4x128xf32, #tpu.memory_space<vmem>>, vector<1x1x4x128xf32>
    %18 = vector.shape_cast %17 : vector<1x1x4x128xf32> to vector<4x128xf32>
    %cst_19 = arith.constant dense<0.000000e+00> : vector<160x128xf32>
    %19 = tpu.matmul %16, %18, %cst_19 {dimension_numbers = #tpu.dot_dimension_numbers<[1], [0], [0], [1], [0, 0, 1, 1], [], []>} : vector<160x4xf32>, vector<4x128xf32>, vector<160x128xf32> -> vector<160x128xf32>
    %20 = vector.extract_strided_slice %1 {offsets = [11, 0], sizes = [160, 4], strides = [1, 1]} : vector<190x4xf32> to vector<160x4xf32>
    %c0_20 = arith.constant 0 : index
    %c4 = arith.constant 4 : index
    %c0_21 = arith.constant 0 : index
    %c0_22 = arith.constant 0 : index
    %21 = vector.load %arg4[%c0_20, %c4, %c0_21, %c0_22] : memref<1x9x4x128xf32, #tpu.memory_space<vmem>>, vector<1x1x4x128xf32>
    %22 = vector.shape_cast %21 : vector<1x1x4x128xf32> to vector<4x128xf32>
    %cst_23 = arith.constant dense<0.000000e+00> : vector<160x128xf32>
    %23 = tpu.matmul %20, %22, %cst_23 {dimension_numbers = #tpu.dot_dimension_numbers<[1], [0], [0], [1], [0, 0, 1, 1], [], []>} : vector<160x4xf32>, vector<4x128xf32>, vector<160x128xf32> -> vector<160x128xf32>
    %24 = arith.addf %19, %23 : vector<160x128xf32>
    %25 = vector.extract_strided_slice %1 {offsets = [12, 0], sizes = [160, 4], strides = [1, 1]} : vector<190x4xf32> to vector<160x4xf32>
    %c0_24 = arith.constant 0 : index
    %c5 = arith.constant 5 : index
    %c0_25 = arith.constant 0 : index
    %c0_26 = arith.constant 0 : index
    %26 = vector.load %arg4[%c0_24, %c5, %c0_25, %c0_26] : memref<1x9x4x128xf32, #tpu.memory_space<vmem>>, vector<1x1x4x128xf32>
    %27 = vector.shape_cast %26 : vector<1x1x4x128xf32> to vector<4x128xf32>
    %cst_27 = arith.constant dense<0.000000e+00> : vector<160x128xf32>
    %28 = tpu.matmul %25, %27, %cst_27 {dimension_numbers = #tpu.dot_dimension_numbers<[1], [0], [0], [1], [0, 0, 1, 1], [], []>} : vector<160x4xf32>, vector<4x128xf32>, vector<160x128xf32> -> vector<160x128xf32>
    %29 = arith.addf %24, %28 : vector<160x128xf32>
    %30 = vector.extract_strided_slice %1 {offsets = [20, 0], sizes = [160, 4], strides = [1, 1]} : vector<190x4xf32> to vector<160x4xf32>
    %c0_28 = arith.constant 0 : index
    %c6 = arith.constant 6 : index
    %c0_29 = arith.constant 0 : index
    %c0_30 = arith.constant 0 : index
    %31 = vector.load %arg4[%c0_28, %c6, %c0_29, %c0_30] : memref<1x9x4x128xf32, #tpu.memory_space<vmem>>, vector<1x1x4x128xf32>
    %32 = vector.shape_cast %31 : vector<1x1x4x128xf32> to vector<4x128xf32>
    %cst_31 = arith.constant dense<0.000000e+00> : vector<160x128xf32>
    %33 = tpu.matmul %30, %32, %cst_31 {dimension_numbers = #tpu.dot_dimension_numbers<[1], [0], [0], [1], [0, 0, 1, 1], [], []>} : vector<160x4xf32>, vector<4x128xf32>, vector<160x128xf32> -> vector<160x128xf32>
    %34 = vector.extract_strided_slice %1 {offsets = [21, 0], sizes = [160, 4], strides = [1, 1]} : vector<190x4xf32> to vector<160x4xf32>
    %c0_32 = arith.constant 0 : index
    %c7 = arith.constant 7 : index
    %c0_33 = arith.constant 0 : index
    %c0_34 = arith.constant 0 : index
    %35 = vector.load %arg4[%c0_32, %c7, %c0_33, %c0_34] : memref<1x9x4x128xf32, #tpu.memory_space<vmem>>, vector<1x1x4x128xf32>
    %36 = vector.shape_cast %35 : vector<1x1x4x128xf32> to vector<4x128xf32>
    %cst_35 = arith.constant dense<0.000000e+00> : vector<160x128xf32>
    %37 = tpu.matmul %34, %36, %cst_35 {dimension_numbers = #tpu.dot_dimension_numbers<[1], [0], [0], [1], [0, 0, 1, 1], [], []>} : vector<160x4xf32>, vector<4x128xf32>, vector<160x128xf32> -> vector<160x128xf32>
    %38 = arith.addf %33, %37 : vector<160x128xf32>
    %39 = vector.extract_strided_slice %1 {offsets = [22, 0], sizes = [160, 4], strides = [1, 1]} : vector<190x4xf32> to vector<160x4xf32>
    %c0_36 = arith.constant 0 : index
    %c8 = arith.constant 8 : index
    %c0_37 = arith.constant 0 : index
    %c0_38 = arith.constant 0 : index
    %40 = vector.load %arg4[%c0_36, %c8, %c0_37, %c0_38] : memref<1x9x4x128xf32, #tpu.memory_space<vmem>>, vector<1x1x4x128xf32>
    %41 = vector.shape_cast %40 : vector<1x1x4x128xf32> to vector<4x128xf32>
    %cst_39 = arith.constant dense<0.000000e+00> : vector<160x128xf32>
    %42 = tpu.matmul %39, %41, %cst_39 {dimension_numbers = #tpu.dot_dimension_numbers<[1], [0], [0], [1], [0, 0, 1, 1], [], []>} : vector<160x4xf32>, vector<4x128xf32>, vector<160x128xf32> -> vector<160x128xf32>
    %43 = arith.addf %38, %42 : vector<160x128xf32>
    %44 = arith.addf %15, %29 : vector<160x128xf32>
    %45 = arith.addf %44, %43 : vector<160x128xf32>
    %c0_40 = arith.constant 0 : index
    %c0_41 = arith.constant 0 : index
    %c0_42 = arith.constant 0 : index
    %46 = vector.load %arg5[%c0_40, %c0_41, %c0_42] : memref<1x1x128xf32, #tpu.memory_space<vmem>>, vector<1x1x128xf32>
    %47 = vector.shape_cast %46 : vector<1x1x128xf32> to vector<1x128xf32>
    %48 = vector.broadcast %47 : vector<1x128xf32> to vector<160x128xf32>
    %49 = arith.addf %45, %48 : vector<160x128xf32>
    %50 = arith.negf %49 : vector<160x128xf32>
    %51 = math.exp %50 : vector<160x128xf32>
    %cst_43 = arith.constant 1.000000e+00 : f32
    %52 = vector.broadcast %cst_43 : f32 to vector<160x128xf32>
    %53 = arith.addf %52, %51 : vector<160x128xf32>
    %54 = arith.divf %52, %53 : vector<160x128xf32>
    %55 = arith.mulf %49, %54 : vector<160x128xf32>
    %c0_44 = arith.constant 0 : index
    %c0_45 = arith.constant 0 : index
    %c0_46 = arith.constant 0 : index
    %c0_47 = arith.constant 0 : index
    %c0_48 = arith.constant 0 : index
    %56 = vector.load %arg6[%c0_44, %c0_45, %c0_46, %c0_47, %c0_48] : memref<1x1x1x160x128xf32, #tpu.memory_space<vmem>>, vector<1x1x1x160x128xf32>
    %57 = vector.shape_cast %56 : vector<1x1x1x160x128xf32> to vector<160x128xf32>
    %58 = vector.shape_cast %55 : vector<160x128xf32> to vector<1x1x1x160x128xf32>
    tpu.vector_store %arg6[%c0_44, %c0_45, %c0_46, %c0_47, %c0_48], %58 {strides = array<i32>} : memref<1x1x1x160x128xf32, #tpu.memory_space<vmem>>, vector<1x1x1x160x128xf32>,
    return
  }
  func.func @transform_0(%arg0: i32, %arg1: i32, %arg2: i32) -> (i32, i32, i32, i32, i32) {
    %c0_i32 = arith.constant 0 : i32
    %c0_i32_0 = arith.constant 0 : i32
    %c0_i32_1 = arith.constant 0 : i32
    return %arg0, %arg1, %arg2, %c0_i32, %c0_i32_0 : i32, i32, i32, i32, i32
  }
  func.func @transform_1(%arg0: i32, %arg1: i32, %arg2: i32) -> (i32, i32, i32, i32) {
    %c0_i32 = arith.constant 0 : i32
    %c0_i32_0 = arith.constant 0 : i32
    %c0_i32_1 = arith.constant 0 : i32
    %c0_i32_2 = arith.constant 0 : i32
    return %arg0, %c0_i32, %c0_i32_0, %c0_i32_1 : i32, i32, i32, i32
  }
  func.func @transform_2(%arg0: i32, %arg1: i32, %arg2: i32) -> (i32, i32, i32) {
    %c0_i32 = arith.constant 0 : i32
    %c0_i32_0 = arith.constant 0 : i32
    %c0_i32_1 = arith.constant 0 : i32
    return %arg0, %c0_i32, %c0_i32_0 : i32, i32, i32
  }
  func.func @transform_3(%arg0: i32, %arg1: i32, %arg2: i32) -> (i32, i32, i32, i32, i32) {
    %c0_i32 = arith.constant 0 : i32
    %c0_i32_0 = arith.constant 0 : i32
    %c0_i32_1 = arith.constant 0 : i32
    return %arg0, %arg1, %arg2, %c0_i32, %c0_i32_0 : i32, i32, i32, i32, i32
  }
}

</mosaic_0001>

<llo_original>
// kernel: focus_h.1
$region0: #{focus_h.1}
  #allocation0 [shape = 'u32[]', space=smem, size = 0x4, offset = 0x4, fixed_abs, tag = 'smem constant byte address 0x4 - core index']
  #allocation1 [shape = 'u32[72,128]{1,0:T(1,128)}', space=vmem, size = 0x9000, scoped, tag = 'internal scratch']
  %s0 = inlined_call_operand.vmem [shape: f32[2,2,1,190,4], index: 0, kind: input, shape index: {}]
  %s1 = inlined_call_operand.vmem [shape: f32[2,9,4,128], index: 1, kind: input, shape index: {}]
  %s2 = inlined_call_operand.vmem [shape: f32[2,1,128], index: 2, kind: input, shape index: {}]
  %s3 = inlined_call_operand.vmem [shape: f32[2,2,1,160,128], index: 3, kind: output, shape index: {}]
  %s4 = sld [smem:[#allocation0]]
  $region45: #{focus_h.1} parent=0
    _
  %s6 = ssub.s32 1, %s4
  %s7 = scalar_select 0, %s6, %s4
  loop: start=0, step=1, limit=6
  $region2: #{focus_h.1} parent=0 // loop_pre_header
    _
  $region3: #{focus_h.1} parent=0 // loop_header
    %s9 = sphi 0, %s13
    %p10 = scmp.ge.s32.totalorder %s9, 6
    %s16 = sphi 0, %s35
    %s17 = sphi 0, %s31
    %s18 = sphi 0, %s27
    %s19 = sphi 0, %s16
    %s20 = sphi 0, %s17
    %s21 = sphi 0, %s18
    %s22 = sphi 0, %s19
    %s23 = sphi 0, %s20
    %s24 = sphi 0, %s21
    %s42 = sphi 0, %s44
    %s45 = sphi 0, %s42
    %s46 = sphi 0, %s45
    %s62 = sphi 0, %s46
    %s68 = sphi 0, %s70
    %s71 = sphi 0, %s68
    %s72 = sphi 0, %s71
    %s88 = sphi 0, %s72
    %s94 = sphi 0, %s96
    %s97 = sphi 0, %s94
    %s98 = sphi 0, %s97
    %s114 = sphi 0, %s98
    %s124 = sphi 0, %s126
    %s127 = sphi 0, %s124
    %s128 = sphi 0, %s127
    %s144 = sphi 0, %s128
  $region4: #{focus_h.1} parent=0 // loop_header_branch
    %12 = sbr.rel (%p10) target = $region8
  $region5: #{focus_h.1} parent=0 // loop_body
    %s14 = ssub.s32 %s9, 1
    %s15 = ssub.s32 %s9, 2
    %s25 = sadd.s32 1, %s18
    %p26 = scmp.ge.s32.totalorder %s25, 1
    %s27 = scalar_select %p26, 0, %s25
    %s28 = sadd.s32 1, %s17
    %s29 = scalar_select %p26, %s28, %s17
    %p30 = scmp.ge.s32.totalorder %s29, 2
    %s31 = scalar_select %p30, 0, %s29
    %s32 = sadd.s32 1, %s16
    %s33 = scalar_select %p30, %s32, %s16
    %p34 = scmp.ge.s32.totalorder %s33, 2
    %s35 = scalar_select %p34, 0, %s33
    %s36 = ssub.s32 %s16, %s35
    %s37 = ssub.s32 %s17, %s31
    %s38 = sor.u32 %s36, %s37
    %s39 = ssub.s32 %s18, %s27
    %s40 = sor.u32 %s38, %s39
    %p41 = scmp.eq.s32.totalorder %s40, 0
    %s43 = sadd.s32 %s42, 1
    %s44 = scalar_select %p41, %s42, %s43
    %p47 = pneg %p41
    %p48 = scmp.eq.s32.totalorder %s9, 3
    %p49 = por %p47, %p48
    %p50 = scmp.ne.s32.totalorder %s42, %s45
    %p51 = scmp.eq.s32.totalorder %s9, 0
    %p52 = por %p50, %p51
    %p53 = scmp.ne.s32.totalorder %s42, %s45
    %p54 = scmp.eq.s32.totalorder %s14, 3
    %p55 = por %p53, %p54
    %p56 = scmp.ne.s32.totalorder %s45, %s46
    %p57 = scmp.eq.s32.totalorder %s14, 0
    %p58 = por %p56, %p57
    %p59 = scmp.ne.s32.totalorder %s45, %s46
    %p60 = scmp.eq.s32.totalorder %s15, 3
    %p61 = por %p59, %p60
    %p63 = scmp.ne.s32.totalorder %s46, %s62
    %p64 = scmp.eq.s32.totalorder %s15, 0
    %p65 = por %p63, %p64
    %s66 = ssub.s32 %s16, %s35
    %p67 = scmp.eq.s32.totalorder %s66, 0
    %s69 = sadd.s32 %s68, 1
    %s70 = scalar_select %p67, %s68, %s69
    %p73 = pneg %p67
    %p74 = scmp.eq.s32.totalorder %s9, 3
    %p75 = por %p73, %p74
    %p76 = scmp.ne.s32.totalorder %s68, %s71
    %p77 = scmp.eq.s32.totalorder %s9, 0
    %p78 = por %p76, %p77
    %p79 = scmp.ne.s32.totalorder %s68, %s71
    %p80 = scmp.eq.s32.totalorder %s14, 3
    %p81 = por %p79, %p80
    %p82 = scmp.ne.s32.totalorder %s71, %s72
    %p83 = scmp.eq.s32.totalorder %s14, 0
    %p84 = por %p82, %p83
    %p85 = scmp.ne.s32.totalorder %s71, %s72
    %p86 = scmp.eq.s32.totalorder %s15, 3
    %p87 = por %p85, %p86
    %p89 = scmp.ne.s32.totalorder %s72, %s88
    %p90 = scmp.eq.s32.totalorder %s15, 0
    %p91 = por %p89, %p90
    %s92 = ssub.s32 %s16, %s35
    %p93 = scmp.eq.s32.totalorder %s92, 0
    %s95 = sadd.s32 %s94, 1
    %s96 = scalar_select %p93, %s94, %s95
    %p99 = pneg %p93
    %p100 = scmp.eq.s32.totalorder %s9, 3
    %p101 = por %p99, %p100
    %p102 = scmp.ne.s32.totalorder %s94, %s97
    %p103 = scmp.eq.s32.totalorder %s9, 0
    %p104 = por %p102, %p103
    %p105 = scmp.ne.s32.totalorder %s94, %s97
    %p106 = scmp.eq.s32.totalorder %s14, 3
    %p107 = por %p105, %p106
    %p108 = scmp.ne.s32.totalorder %s97, %s98
    %p109 = scmp.eq.s32.totalorder %s14, 0
    %p110 = por %p108, %p109
    %p111 = scmp.ne.s32.totalorder %s97, %s98
    %p112 = scmp.eq.s32.totalorder %s15, 3
    %p113 = por %p111, %p112
    %p115 = scmp.ne.s32.totalorder %s98, %s114
    %p116 = scmp.eq.s32.totalorder %s15, 0
    %p117 = por %p115, %p116
    %s118 = ssub.s32 %s16, %s35
    %s119 = ssub.s32 %s17, %s31
    %s120 = sor.u32 %s118, %s119
    %s121 = ssub.s32 %s18, %s27
    %s122 = sor.u32 %s120, %s121
    %p123 = scmp.eq.s32.totalorder %s122, 0
    %s125 = sadd.s32 %s124, 1
    %s126 = scalar_select %p123, %s124, %s125
    %p129 = pneg %p123
    %p130 = scmp.eq.s32.totalorder %s9, 3
    %p131 = por %p129, %p130
    %p132 = scmp.ne.s32.totalorder %s124, %s127
    %p133 = scmp.eq.s32.totalorder %s9, 0
    %p134 = por %p132, %p133
    %p135 = scmp.ne.s32.totalorder %s124, %s127
    %p136 = scmp.eq.s32.totalorder %s14, 3
    %p137 = por %p135, %p136
    %p138 = scmp.ne.s32.totalorder %s127, %s128
    %p139 = scmp.eq.s32.totalorder %s14, 0
    %p140 = por %p138, %p139
    %p141 = scmp.ne.s32.totalorder %s127, %s128
    %p142 = scmp.eq.s32.totalorder %s15, 3
    %p143 = por %p141, %p142
    %p145 = scmp.ne.s32.totalorder %s128, %s144
    %p146 = scmp.eq.s32.totalorder %s15, 0
    %p147 = por %p145, %p146
    %p148 = scmp.le.s32.totalorder 1, %s9
    %p149 = scmp.lt.s32.totalorder %s9, 5
    %p150 = pnand %p148, %p149
    %p151 = pneg %p150
    // Predicated region
    $region9: #{focus_h.1} parent=5 // pred_check
      _
    $region10: #{focus_h.1} parent=5 // pred_check_branch
      %153 = sbr.rel (%p150) target = $region12
    $region11: #{focus_h.1} parent=5 // pred_region
      %s154 = ssub.s32 %s9, 1
    $region12: #{focus_h.1} parent=5 // pred_fallthru
      _
    %p155 = scmp.lt.s32.totalorder %s9, 4
    // Predicated region
    $region13: #{focus_h.1} parent=5 // pred_check
      %p156 = pneg %p155
    $region14: #{focus_h.1} parent=5 // pred_check_branch
      %158 = sbr.rel (%p156) target = $region16
    $region15: #{focus_h.1} parent=5 // pred_region
      // Predicated region
      $region17: #{focus_h.1} parent=15 // pred_check
        %p159 = pneg %p52
      $region18: #{focus_h.1} parent=15 // pred_check_branch
        %161 = sbr.rel (%p159) target = $region20
      $region19: #{focus_h.1} parent=15 // pred_region
        %p162 = scmp.lt.s32.totalorder %s16, 1
        %s163 = scalar_select %p162, %s16, 1
        %p164 = scmp.lt.s32.totalorder %s17, 1
        %s165 = scalar_select %p164, %s17, 1
        %p166 = scmp.lt.s32.totalorder %s18, 0
        %s167 = scalar_select %p166, %s18, 0
        %s168 = smul.addr %s167, 24
        %s169 = smul.addr %s165, 24
        %s170 = sadd.s32 %s168, %s169
        %s171 = smul.addr %s163, 48
        %s172 = sadd.s32 %s170, %s171
        %s173 = smul.addr %s172, 8
        %s174 = scalar_lea.vmem %s0, %s173
      $region20: #{focus_h.1} parent=15 // pred_fallthru
        _
      // Predicated region
      $region21: #{focus_h.1} parent=15 // pred_check
        %p175 = pneg %p78
      $region22: #{focus_h.1} parent=15 // pred_check_branch
        %177 = sbr.rel (%p175) target = $region24
      $region23: #{focus_h.1} parent=15 // pred_region
        %p178 = scmp.lt.s32.totalorder %s16, 1
        %s179 = scalar_select %p178, %s16, 1
        %s180 = smul.addr %s179, 9
        %s181 = smul.addr %s180, 4
        %s182 = scalar_lea.vmem %s1, %s181
      $region24: #{focus_h.1} parent=15 // pred_fallthru
        _
      // Predicated region
      $region25: #{focus_h.1} parent=15 // pred_check
        %p183 = pneg %p104
      $region26: #{focus_h.1} parent=15 // pred_check_branch
        %185 = sbr.rel (%p183) target = $region28
      $region27: #{focus_h.1} parent=15 // pred_region
        %p186 = scmp.lt.s32.totalorder %s16, 1
        %s187 = scalar_select %p186, %s16, 1
        %s188 = scalar_lea.vmem %s2, %s187
      $region28: #{focus_h.1} parent=15 // pred_fallthru
        _
    $region16: #{focus_h.1} parent=5 // pred_fallthru
      _
    %p189 = scmp.le.s32.totalorder 1, %s9
    %p190 = scmp.lt.s32.totalorder %s9, 5
    %p191 = pnand %p189, %p190
    %p192 = pneg %p191
    // Predicated region
    $region29: #{focus_h.1} parent=5 // pred_check
      _
    $region30: #{focus_h.1} parent=5 // pred_check_branch
      %194 = sbr.rel (%p191) target = $region32
    $region31: #{focus_h.1} parent=5 // pred_region
      %s195 = ssub.s32 %s9, 1
      %p196 = scmp.lt.s32.totalorder %s19, 1
      %s197 = scalar_select %p196, %s19, 1
      %p198 = scmp.lt.s32.totalorder %s20, 1
      %s199 = scalar_select %p198, %s20, 1
      %p200 = scmp.lt.s32.totalorder %s21, 0
      %s201 = scalar_select %p200, %s21, 0
      %s202 = smul.addr %s201, 24
      %s203 = smul.addr %s199, 24
      %s204 = sadd.s32 %s202, %s203
      %s205 = smul.addr %s197, 48
      %s206 = sadd.s32 %s204, %s205
      %s207 = smul.addr %s206, 8
      %s208 = scalar_lea.vmem %s0, %s207
      %p209 = pneg %p58
      %p210 = pneg %p55
      %p211 = scmp.lt.s32.totalorder %s19, 1
      %s212 = scalar_select %p211, %s19, 1
      %s213 = smul.addr %s212, 9
      %s214 = smul.addr %s213, 4
      %s215 = scalar_lea.vmem %s1, %s214
      %p216 = pneg %p84
      %p217 = pneg %p81
      %p218 = scmp.lt.s32.totalorder %s19, 1
      %s219 = scalar_select %p218, %s19, 1
      %s220 = scalar_lea.vmem %s2, %s219
      %p221 = pneg %p110
      %p222 = pneg %p107
      %p223 = pneg %p140
      %p224 = pneg %p137
      %p225 = scmp.lt.s32.totalorder %s19, 1
      %s226 = scalar_select %p225, %s19, 1
      %p227 = scmp.lt.s32.totalorder %s20, 1
      %s228 = scalar_select %p227, %s20, 1
      %p229 = scmp.lt.s32.totalorder %s21, 0
      %s230 = scalar_select %p229, %s21, 0
      %s231 = smul.addr %s230, 20
      %s232 = smul.addr %s228, 20
      %s233 = sadd.s32 %s231, %s232
      %s234 = smul.addr %s226, 40
      %s235 = sadd.s32 %s233, %s234
      %s236 = smul.addr %s235, 8
      %s237 = scalar_lea.vmem %s3, %s236
      %p238 = scmp.lt.s32.totalorder %s19, 1
      %s239 = scalar_select %p238, %s19, 1
      %p240 = scmp.lt.s32.totalorder %s20, 1
      %s241 = scalar_select %p240, %s20, 1
      %p242 = scmp.lt.s32.totalorder %s21, 0
      %s243 = scalar_select %p242, %s21, 0
      %s244 = smul.addr %s243, 24
      %s245 = smul.addr %s241, 24
      %s246 = sadd.s32 %s244, %s245
      %s247 = smul.addr %s239, 48
      %s248 = sadd.s32 %s246, %s247
      %s249 = smul.addr %s248, 8
      %s250 = scalar_lea.vmem %s0, %s249
      %p251 = scmp.lt.s32.totalorder %s19, 1
      %s252 = scalar_select %p251, %s19, 1
      %s253 = smul.addr %s252, 9
      %s254 = smul.addr %s253, 4
      %s255 = scalar_lea.vmem %s1, %s254
      %p256 = scmp.lt.s32.totalorder %s19, 1
      %s257 = scalar_select %p256, %s19, 1
      %s258 = scalar_lea.vmem %s2, %s257
      %p259 = scmp.lt.s32.totalorder %s19, 1
      %s260 = scalar_select %p259, %s19, 1
      %p261 = scmp.lt.s32.totalorder %s20, 1
      %s262 = scalar_select %p261, %s20, 1
      %p263 = scmp.lt.s32.totalorder %s21, 0
      %s264 = scalar_select %p263, %s21, 0
      %s265 = smul.addr %s264, 20
      %s266 = smul.addr %s262, 20
      %s267 = sadd.s32 %s265, %s266
      %s268 = smul.addr %s260, 40
      %s269 = sadd.s32 %s267, %s268
      %s270 = smul.addr %s269, 8
      %s271 = scalar_lea.vmem %s3, %s270
      %v272 = vld [vmem:[%s250] sm:$0xff]
      %v273 = vld [vmem:[%s250 + $0x8] sm:$0xff]
      %v274 = vld [vmem:[%s250 + $0x10] sm:$0xff]
      %v275 = vld [vmem:[%s250 + $0x18] sm:$0xff]
      %v276 = vld [vmem:[%s250 + $0x20] sm:$0xff]
      %v277 = vld [vmem:[%s250 + $0x28] sm:$0xff]
      %v278 = vld [vmem:[%s250 + $0x30] sm:$0xff]
      %v279 = vld [vmem:[%s250 + $0x38] sm:$0xff]
      %v280 = vld [vmem:[%s250 + $0x40] sm:$0xff]
      %v281 = vld [vmem:[%s250 + $0x48] sm:$0xff]
      %v282 = vld [vmem:[%s250 + $0x50] sm:$0xff]
      %v283 = vld [vmem:[%s250 + $0x58] sm:$0xff]
      %v284 = vld [vmem:[%s250 + $0x60] sm:$0xff]
      %v285 = vld [vmem:[%s250 + $0x68] sm:$0xff]
      %v286 = vld [vmem:[%s250 + $0x70] sm:$0xff]
      %v287 = vld [vmem:[%s250 + $0x78] sm:$0xff]
      %v288 = vld [vmem:[%s250 + $0x80] sm:$0xff]
      %v289 = vld [vmem:[%s250 + $0x88] sm:$0xff]
      %v290 = vld [vmem:[%s250 + $0x90] sm:$0xff]
      %v291 = vld [vmem:[%s250 + $0x98] sm:$0xff]
      %v292 = vld [vmem:[%s250 + $0xa0] sm:$0xff]
      %v293 = vld [vmem:[%s250 + $0xa8] sm:$0xff]
      %v294 = vld [vmem:[%s250 + $0xb0] sm:$0xff]
      %v295 = vld [vmem:[%s255] sm:$0xf]
      %s296 = scalar_lea.vmem %s255, 4
      %v297 = vld [vmem:[%s296] sm:$0xf]
      %vm319 = vcmask 1046528
      %v320 = vrot.slane %v272, 1
      %v321 = vrot.slane %v273, 1
      %v322 = vsel %vm319, %v320, %v321
      %v323 = vrot.slane %v274, 1
      %v324 = vsel %vm319, %v321, %v323
      %v325 = vrot.slane %v275, 1
      %v326 = vsel %vm319, %v323, %v325
      %v327 = vrot.slane %v276, 1
      %v328 = vsel %vm319, %v325, %v327
      %v329 = vrot.slane %v277, 1
      %v330 = vsel %vm319, %v327, %v329
      %v331 = vrot.slane %v278, 1
      %v332 = vsel %vm319, %v329, %v331
      %v333 = vrot.slane %v279, 1
      %v334 = vsel %vm319, %v331, %v333
      %v335 = vrot.slane %v280, 1
      %v336 = vsel %vm319, %v333, %v335
      %v337 = vrot.slane %v281, 1
      %v338 = vsel %vm319, %v335, %v337
      %v339 = vrot.slane %v282, 1
      %v340 = vsel %vm319, %v337, %v339
      %v341 = vrot.slane %v283, 1
      %v342 = vsel %vm319, %v339, %v341
      %v343 = vrot.slane %v284, 1
      %v344 = vsel %vm319, %v341, %v343
      %v345 = vrot.slane %v285, 1
      %v346 = vsel %vm319, %v343, %v345
      %v347 = vrot.slane %v286, 1
      %v348 = vsel %vm319, %v345, %v347
      %v349 = vrot.slane %v287, 1
      %v350 = vsel %vm319, %v347, %v349
      %v351 = vrot.slane %v288, 1
      %v352 = vsel %vm319, %v349, %v351
      %v353 = vrot.slane %v289, 1
      %v354 = vsel %vm319, %v351, %v353
      %v355 = vrot.slane %v290, 1
      %v356 = vsel %vm319, %v353, %v355
      %v357 = vrot.slane %v291, 1
      %v358 = vsel %vm319, %v355, %v357
      %v359 = vrot.slane %v292, 1
      %v360 = vsel %vm319, %v357, %v359
      %vm361 = vcmask 31744
      %v362 = vsel %vm361, %v322, 0
      %v364 = vsel %vm361, %v324, 0
      %v366 = vsel %vm361, %v326, 0
      %v368 = vsel %vm361, %v328, 0
      %v370 = vsel %vm361, %v330, 0
      %v372 = vsel %vm361, %v332, 0
      %v374 = vsel %vm361, %v334, 0
      %v376 = vsel %vm361, %v336, 0
      %v378 = vsel %vm361, %v338, 0
      %v380 = vsel %vm361, %v340, 0
      %v382 = vsel %vm361, %v342, 0
      %v384 = vsel %vm361, %v344, 0
      %v386 = vsel %vm361, %v346, 0
      %v388 = vsel %vm361, %v348, 0
      %v390 = vsel %vm361, %v350, 0
      %v392 = vsel %vm361, %v352, 0
      %v394 = vsel %vm361, %v354, 0
      %v396 = vsel %vm361, %v356, 0
      %v398 = vsel %vm361, %v358, 0
      %v400 = vsel %vm361, %v360, 0
      %vm402 = vcmask 1043456
      %v404 = vsel %vm402, %v297, 0
      %406 = vmatpush.msra.mxu0 0.0
      %407 = vmatpush.msra.mxu0 0.0
      %408 = vmatpush.msra.mxu0 0.0
      %409 = vmatpush.msra.mxu0 0.0
      %410 = vmatpush.msra.mxu0 0.0
      %411 = vmatpush.msra.mxu0 0.0
      %412 = vmatpush.msra.mxu0 0.0
      %413 = vmatpush.msra.mxu0 0.0
      %414 = vmatpush.msra.mxu0 0.0
      %415 = vmatpush.msra.mxu0 0.0
      %416 = vmatpush.msra.mxu0 0.0
      %417 = vmatpush.msra.mxu0 0.0
      %418 = vmatpush.msra.mxu0 0.0
      %419 = vmatpush.msra.mxu0 0.0
      %420 = vmatpush.msra.mxu0 0.0
      %421 = vmatpush.msra.mxu0 %v404
      %422 = vmatmul.f32.gmra.mxu0 %v362
      %v423 = vpop.f32.mrf.mxu0
      %v424 = vadd.f32 0.0, %v423
      %425 = vmatmul.f32.gmra.mxu0 %v364
      %v426 = vpop.f32.mrf.mxu0
      %v427 = vadd.f32 0.0, %v426
      %428 = vmatmul.f32.gmra.mxu0 %v366
      %v429 = vpop.f32.mrf.mxu0
      %v430 = vadd.f32 0.0, %v429
      %431 = vmatmul.f32.gmra.mxu0 %v368
      %v432 = vpop.f32.mrf.mxu0
      %v433 = vadd.f32 0.0, %v432
      %434 = vmatmul.f32.gmra.mxu0 %v370
      %v435 = vpop.f32.mrf.mxu0
      %v436 = vadd.f32 0.0, %v435
      %437 = vmatmul.f32.gmra.mxu0 %v372
      %v438 = vpop.f32.mrf.mxu0
      %v439 = vadd.f32 0.0, %v438
      %440 = vmatmul.f32.gmra.mxu0 %v374
      %v441 = vpop.f32.mrf.mxu0
      %v442 = vadd.f32 0.0, %v441
      %443 = vmatmul.f32.gmra.mxu0 %v376
      %v444 = vpop.f32.mrf.mxu0
      %v445 = vadd.f32 0.0, %v444
      %446 = vmatmul.f32.gmra.mxu0 %v378
      %v447 = vpop.f32.mrf.mxu0
      %v448 = vadd.f32 0.0, %v447
      %449 = vmatmul.f32.gmra.mxu0 %v380
      %v450 = vpop.f32.mrf.mxu0
      %v451 = vadd.f32 0.0, %v450
      %452 = vmatmul.f32.gmra.mxu0 %v382
      %v453 = vpop.f32.mrf.mxu0
      %v454 = vadd.f32 0.0, %v453
      %455 = vmatmul.f32.gmra.mxu0 %v384
      %v456 = vpop.f32.mrf.mxu0
      %v457 = vadd.f32 0.0, %v456
      %458 = vmatmul.f32.gmra.mxu0 %v386
      %v459 = vpop.f32.mrf.mxu0
      %v460 = vadd.f32 0.0, %v459
      %461 = vmatmul.f32.gmra.mxu0 %v388
      %v462 = vpop.f32.mrf.mxu0
      %v463 = vadd.f32 0.0, %v462
      %464 = vmatmul.f32.gmra.mxu0 %v390
      %v465 = vpop.f32.mrf.mxu0
      %v466 = vadd.f32 0.0, %v465
      %467 = vmatmul.f32.gmra.mxu0 %v392
      %v468 = vpop.f32.mrf.mxu0
      %v469 = vadd.f32 0.0, %v468
      %470 = vmatmul.f32.gmra.mxu0 %v394
      %v471 = vpop.f32.mrf.mxu0
      %v472 = vadd.f32 0.0, %v471
      %473 = vmatmul.f32.gmra.mxu0 %v396
      %v474 = vpop.f32.mrf.mxu0
      %v475 = vadd.f32 0.0, %v474
      %476 = vmatmul.f32.gmra.mxu0 %v398
      %v477 = vpop.f32.mrf.mxu0
      %v478 = vadd.f32 0.0, %v477
      %479 = vmatmul.f32.gmra.mxu0 %v400
      %v480 = vpop.f32.mrf.mxu0
      %v481 = vadd.f32 0.0, %v480
      %482 = vdwg.mxu0
      %v483 = vsel %vm361, %v272, 0
      %v485 = vsel %vm361, %v273, 0
      %v487 = vsel %vm361, %v274, 0
      %v489 = vsel %vm361, %v275, 0
      %v491 = vsel %vm361, %v276, 0
      %v493 = vsel %vm361, %v277, 0
      %v495 = vsel %vm361, %v278, 0
      %v497 = vsel %vm361, %v279, 0
      %v499 = vsel %vm361, %v280, 0
      %v501 = vsel %vm361, %v281, 0
      %v503 = vsel %vm361, %v282, 0
      %v505 = vsel %vm361, %v283, 0
      %v507 = vsel %vm361, %v284, 0
      %v509 = vsel %vm361, %v285, 0
      %v511 = vsel %vm361, %v286, 0
      %v513 = vsel %vm361, %v287, 0
      %v515 = vsel %vm361, %v288, 0
      %v517 = vsel %vm361, %v289, 0
      %v519 = vsel %vm361, %v290, 0
      %v521 = vsel %vm361, %v291, 0
      %v524 = vsel %vm402, %v295, 0
      %526 = vmatpush.msra.mxu0 0.0
      %527 = vmatpush.msra.mxu0 0.0
      %528 = vmatpush.msra.mxu0 0.0
      %529 = vmatpush.msra.mxu0 0.0
      %530 = vmatpush.msra.mxu0 0.0
      %531 = vmatpush.msra.mxu0 0.0
      %532 = vmatpush.msra.mxu0 0.0
      %533 = vmatpush.msra.mxu0 0.0
      %534 = vmatpush.msra.mxu0 0.0
      %535 = vmatpush.msra.mxu0 0.0
      %536 = vmatpush.msra.mxu0 0.0
      %537 = vmatpush.msra.mxu0 0.0
      %538 = vmatpush.msra.mxu0 0.0
      %539 = vmatpush.msra.mxu0 0.0
      %540 = vmatpush.msra.mxu0 0.0
      %541 = vmatpush.msra.mxu0 %v524
      %542 = vmatmul.f32.gmra.mxu0 %v483
      %v543 = vpop.f32.mrf.mxu0
      %v544 = vadd.f32 %v424, %v543
      %545 = vmatmul.f32.gmra.mxu0 %v485
      %v546 = vpop.f32.mrf.mxu0
      %v547 = vadd.f32 %v427, %v546
      %548 = vmatmul.f32.gmra.mxu0 %v487
      %v549 = vpop.f32.mrf.mxu0
      %v550 = vadd.f32 %v430, %v549
      %551 = vmatmul.f32.gmra.mxu0 %v489
      %v552 = vpop.f32.mrf.mxu0
      %v553 = vadd.f32 %v433, %v552
      %554 = vmatmul.f32.gmra.mxu0 %v491
      %v555 = vpop.f32.mrf.mxu0
      %v556 = vadd.f32 %v436, %v555
      %557 = vmatmul.f32.gmra.mxu0 %v493
      %v558 = vpop.f32.mrf.mxu0
      %v559 = vadd.f32 %v439, %v558
      %560 = vmatmul.f32.gmra.mxu0 %v495
      %v561 = vpop.f32.mrf.mxu0
      %v562 = vadd.f32 %v442, %v561
      %563 = vmatmul.f32.gmra.mxu0 %v497
      %v564 = vpop.f32.mrf.mxu0
      %v565 = vadd.f32 %v445, %v564
      %566 = vmatmul.f32.gmra.mxu0 %v499
      %v567 = vpop.f32.mrf.mxu0
      %v568 = vadd.f32 %v448, %v567
      %569 = vmatmul.f32.gmra.mxu0 %v501
      %v570 = vpop.f32.mrf.mxu0
      %v571 = vadd.f32 %v451, %v570
      %572 = vmatmul.f32.gmra.mxu0 %v503
      %v573 = vpop.f32.mrf.mxu0
      %v574 = vadd.f32 %v454, %v573
      %575 = vmatmul.f32.gmra.mxu0 %v505
      %v576 = vpop.f32.mrf.mxu0
      %v577 = vadd.f32 %v457, %v576
      %578 = vmatmul.f32.gmra.mxu0 %v507
      %v579 = vpop.f32.mrf.mxu0
      %v580 = vadd.f32 %v460, %v579
      %581 = vmatmul.f32.gmra.mxu0 %v509
      %v582 = vpop.f32.mrf.mxu0
      %v583 = vadd.f32 %v463, %v582
      %584 = vmatmul.f32.gmra.mxu0 %v511
      %v585 = vpop.f32.mrf.mxu0
      %v586 = vadd.f32 %v466, %v585
      %587 = vmatmul.f32.gmra.mxu0 %v513
      %v588 = vpop.f32.mrf.mxu0
      %v589 = vadd.f32 %v469, %v588
      %590 = vmatmul.f32.gmra.mxu0 %v515
      %v591 = vpop.f32.mrf.mxu0
      %v592 = vadd.f32 %v472, %v591
      %593 = vmatmul.f32.gmra.mxu0 %v517
      %v594 = vpop.f32.mrf.mxu0
      %v595 = vadd.f32 %v475, %v594
      %596 = vmatmul.f32.gmra.mxu0 %v519
      %v597 = vpop.f32.mrf.mxu0
      %v598 = vadd.f32 %v478, %v597
      %599 = vmatmul.f32.gmra.mxu0 %v521
      %v600 = vpop.f32.mrf.mxu0
      %v601 = vadd.f32 %v481, %v600
      %602 = vdwg.mxu0
      %s603 = scalar_lea.vmem %s255, 8
      %v604 = vld [vmem:[%s603] sm:$0xf]
      %vm605 = vcmask 1045504
      %v606 = vrot.slane %v272, 2
      %v607 = vrot.slane %v273, 2
      %v608 = vsel %vm605, %v606, %v607
      %v609 = vrot.slane %v274, 2
      %v610 = vsel %vm605, %v607, %v609
      %v611 = vrot.slane %v275, 2
      %v612 = vsel %vm605, %v609, %v611
      %v613 = vrot.slane %v276, 2
      %v614 = vsel %vm605, %v611, %v613
      %v615 = vrot.slane %v277, 2
      %v616 = vsel %vm605, %v613, %v615
      %v617 = vrot.slane %v278, 2
      %v618 = vsel %vm605, %v615, %v617
      %v619 = vrot.slane %v279, 2
      %v620 = vsel %vm605, %v617, %v619
      %v621 = vrot.slane %v280, 2
      %v622 = vsel %vm605, %v619, %v621
      %v623 = vrot.slane %v281, 2
      %v624 = vsel %vm605, %v621, %v623
      %v625 = vrot.slane %v282, 2
      %v626 = vsel %vm605, %v623, %v625
      %v627 = vrot.slane %v283, 2
      %v628 = vsel %vm605, %v625, %v627
      %v629 = vrot.slane %v284, 2
      %v630 = vsel %vm605, %v627, %v629
      %v631 = vrot.slane %v285, 2
      %v632 = vsel %vm605, %v629, %v631
      %v633 = vrot.slane %v286, 2
      %v634 = vsel %vm605, %v631, %v633
      %v635 = vrot.slane %v287, 2
      %v636 = vsel %vm605, %v633, %v635
      %v637 = vrot.slane %v288, 2
      %v638 = vsel %vm605, %v635, %v637
      %v639 = vrot.slane %v289, 2
      %v640 = vsel %vm605, %v637, %v639
      %v641 = vrot.slane %v290, 2
      %v642 = vsel %vm605, %v639, %v641
      %v643 = vrot.slane %v291, 2
      %v644 = vsel %vm605, %v641, %v643
      %v645 = vrot.slane %v292, 2
      %v646 = vsel %vm605, %v643, %v645
      %v647 = vsel %vm361, %v608, 0
      %v649 = vsel %vm361, %v610, 0
      %v651 = vsel %vm361, %v612, 0
      %v653 = vsel %vm361, %v614, 0
      %v655 = vsel %vm361, %v616, 0
      %v657 = vsel %vm361, %v618, 0
      %v659 = vsel %vm361, %v620, 0
      %v661 = vsel %vm361, %v622, 0
      %v663 = vsel %vm361, %v624, 0
      %v665 = vsel %vm361, %v626, 0
      %v667 = vsel %vm361, %v628, 0
      %v669 = vsel %vm361, %v630, 0
      %v671 = vsel %vm361, %v632, 0
      %v673 = vsel %vm361, %v634, 0
      %v675 = vsel %vm361, %v636, 0
      %v677 = vsel %vm361, %v638, 0
      %v679 = vsel %vm361, %v640, 0
      %v681 = vsel %vm361, %v642, 0
      %v683 = vsel %vm361, %v644, 0
      %v685 = vsel %vm361, %v646, 0
      %v688 = vsel %vm402, %v604, 0
      %690 = vmatpush.msra.mxu0 0.0
      %691 = vmatpush.msra.mxu0 0.0
      %692 = vmatpush.msra.mxu0 0.0
      %693 = vmatpush.msra.mxu0 0.0
      %694 = vmatpush.msra.mxu0 0.0
      %695 = vmatpush.msra.mxu0 0.0
      %696 = vmatpush.msra.mxu0 0.0
      %697 = vmatpush.msra.mxu0 0.0
      %698 = vmatpush.msra.mxu0 0.0
      %699 = vmatpush.msra.mxu0 0.0
      %700 = vmatpush.msra.mxu0 0.0
      %701 = vmatpush.msra.mxu0 0.0
      %702 = vmatpush.msra.mxu0 0.0
      %703 = vmatpush.msra.mxu0 0.0
      %704 = vmatpush.msra.mxu0 0.0
      %705 = vmatpush.msra.mxu0 %v688
      %706 = vmatmul.f32.gmra.mxu0 %v647
      %v707 = vpop.f32.mrf.mxu0
      %v708 = vadd.f32 0.0, %v707
      %709 = vmatmul.f32.gmra.mxu0 %v649
      %v710 = vpop.f32.mrf.mxu0
      %v711 = vadd.f32 0.0, %v710
      %712 = vmatmul.f32.gmra.mxu0 %v651
      %v713 = vpop.f32.mrf.mxu0
      %v714 = vadd.f32 0.0, %v713
      %715 = vmatmul.f32.gmra.mxu0 %v653
      %v716 = vpop.f32.mrf.mxu0
      %v717 = vadd.f32 0.0, %v716
      %718 = vmatmul.f32.gmra.mxu0 %v655
      %v719 = vpop.f32.mrf.mxu0
      %v720 = vadd.f32 0.0, %v719
      %721 = vmatmul.f32.gmra.mxu0 %v657
      %v722 = vpop.f32.mrf.mxu0
      %v723 = vadd.f32 0.0, %v722
      %724 = vmatmul.f32.gmra.mxu0 %v659
      %v725 = vpop.f32.mrf.mxu0
      %v726 = vadd.f32 0.0, %v725
      %727 = vmatmul.f32.gmra.mxu0 %v661
      %v728 = vpop.f32.mrf.mxu0
      %v729 = vadd.f32 0.0, %v728
      %730 = vmatmul.f32.gmra.mxu0 %v663
      %v731 = vpop.f32.mrf.mxu0
      %v732 = vadd.f32 0.0, %v731
      %733 = vmatmul.f32.gmra.mxu0 %v665
      %v734 = vpop.f32.mrf.mxu0
      %v735 = vadd.f32 0.0, %v734
      %736 = vmatmul.f32.gmra.mxu0 %v667
      %v737 = vpop.f32.mrf.mxu0
      %v738 = vadd.f32 0.0, %v737
      %739 = vmatmul.f32.gmra.mxu0 %v669
      %v740 = vpop.f32.mrf.mxu0
      %v741 = vadd.f32 0.0, %v740
      %742 = vmatmul.f32.gmra.mxu0 %v671
      %v743 = vpop.f32.mrf.mxu0
      %v744 = vadd.f32 0.0, %v743
      %745 = vmatmul.f32.gmra.mxu0 %v673
      %v746 = vpop.f32.mrf.mxu0
      %v747 = vadd.f32 0.0, %v746
      %748 = vmatmul.f32.gmra.mxu0 %v675
      %v749 = vpop.f32.mrf.mxu0
      %v750 = vadd.f32 0.0, %v749
      %751 = vmatmul.f32.gmra.mxu0 %v677
      %v752 = vpop.f32.mrf.mxu0
      %v753 = vadd.f32 0.0, %v752
      %754 = vmatmul.f32.gmra.mxu0 %v679
      %v755 = vpop.f32.mrf.mxu0
      %v756 = vadd.f32 0.0, %v755
      %757 = vmatmul.f32.gmra.mxu0 %v681
      %v758 = vpop.f32.mrf.mxu0
      %v759 = vadd.f32 0.0, %v758
      %760 = vmatmul.f32.gmra.mxu0 %v683
      %v761 = vpop.f32.mrf.mxu0
      %v762 = vadd.f32 0.0, %v761
      %763 = vmatmul.f32.gmra.mxu0 %v685
      %v764 = vpop.f32.mrf.mxu0
      %v765 = vadd.f32 0.0, %v764
      %766 = vdwg.mxu0
      %v767 = vadd.f32 %v544, %v708
      %v768 = vadd.f32 %v547, %v711
      %v769 = vadd.f32 %v550, %v714
      %v770 = vadd.f32 %v553, %v717
      %v771 = vadd.f32 %v556, %v720
      %v772 = vadd.f32 %v559, %v723
      %v773 = vadd.f32 %v562, %v726
      %v774 = vadd.f32 %v565, %v729
      %v775 = vadd.f32 %v568, %v732
      %v776 = vadd.f32 %v571, %v735
      %v777 = vadd.f32 %v574, %v738
      %v778 = vadd.f32 %v577, %v741
      %v779 = vadd.f32 %v580, %v744
      %v780 = vadd.f32 %v583, %v747
      %v781 = vadd.f32 %v586, %v750
      %v782 = vadd.f32 %v589, %v753
      %v783 = vadd.f32 %v592, %v756
      %v784 = vadd.f32 %v595, %v759
      %v785 = vadd.f32 %v598, %v762
      %v786 = vadd.f32 %v601, %v765
      %s787 = scalar_lea.vmem %s255, 12
      %v788 = vld [vmem:[%s787] sm:$0xf]
      %s789 = scalar_lea.vmem %s255, 16
      %v790 = vld [vmem:[%s789] sm:$0xf]
      %vm792 = vcmask 1044480
      %v793 = vrot.slane %v273, 3
      %v794 = vrot.slane %v274, 3
      %v795 = vsel %vm792, %v793, %v794
      %v796 = vrot.slane %v275, 3
      %v797 = vsel %vm792, %v794, %v796
      %v798 = vrot.slane %v276, 3
      %v799 = vsel %vm792, %v796, %v798
      %v800 = vrot.slane %v277, 3
      %v801 = vsel %vm792, %v798, %v800
      %v802 = vrot.slane %v278, 3
      %v803 = vsel %vm792, %v800, %v802
      %v804 = vrot.slane %v279, 3
      %v805 = vsel %vm792, %v802, %v804
      %v806 = vrot.slane %v280, 3
      %v807 = vsel %vm792, %v804, %v806
      %v808 = vrot.slane %v281, 3
      %v809 = vsel %vm792, %v806, %v808
      %v810 = vrot.slane %v282, 3
      %v811 = vsel %vm792, %v808, %v810
      %v812 = vrot.slane %v283, 3
      %v813 = vsel %vm792, %v810, %v812
      %v814 = vrot.slane %v284, 3
      %v815 = vsel %vm792, %v812, %v814
      %v816 = vrot.slane %v285, 3
      %v817 = vsel %vm792, %v814, %v816
      %v818 = vrot.slane %v286, 3
      %v819 = vsel %vm792, %v816, %v818
      %v820 = vrot.slane %v287, 3
      %v821 = vsel %vm792, %v818, %v820
      %v822 = vrot.slane %v288, 3
      %v823 = vsel %vm792, %v820, %v822
      %v824 = vrot.slane %v289, 3
      %v825 = vsel %vm792, %v822, %v824
      %v826 = vrot.slane %v290, 3
      %v827 = vsel %vm792, %v824, %v826
      %v828 = vrot.slane %v291, 3
      %v829 = vsel %vm792, %v826, %v828
      %v830 = vrot.slane %v292, 3
      %v831 = vsel %vm792, %v828, %v830
      %v832 = vrot.slane %v293, 3
      %v833 = vsel %vm792, %v830, %v832
      %v834 = vsel %vm361, %v795, 0
      %v836 = vsel %vm361, %v797, 0
      %v838 = vsel %vm361, %v799, 0
      %v840 = vsel %vm361, %v801, 0
      %v842 = vsel %vm361, %v803, 0
      %v844 = vsel %vm361, %v805, 0
      %v846 = vsel %vm361, %v807, 0
      %v848 = vsel %vm361, %v809, 0
      %v850 = vsel %vm361, %v811, 0
      %v852 = vsel %vm361, %v813, 0
      %v854 = vsel %vm361, %v815, 0
      %v856 = vsel %vm361, %v817, 0
      %v858 = vsel %vm361, %v819, 0
      %v860 = vsel %vm361, %v821, 0
      %v862 = vsel %vm361, %v823, 0
      %v864 = vsel %vm361, %v825, 0
      %v866 = vsel %vm361, %v827, 0
      %v868 = vsel %vm361, %v829, 0
      %v870 = vsel %vm361, %v831, 0
      %v872 = vsel %vm361, %v833, 0
      %v875 = vsel %vm402, %v790, 0
      %877 = vmatpush.msra.mxu0 0.0
      %878 = vmatpush.msra.mxu0 0.0
      %879 = vmatpush.msra.mxu0 0.0
      %880 = vmatpush.msra.mxu0 0.0
      %881 = vmatpush.msra.mxu0 0.0
      %882 = vmatpush.msra.mxu0 0.0
      %883 = vmatpush.msra.mxu0 0.0
      %884 = vmatpush.msra.mxu0 0.0
      %885 = vmatpush.msra.mxu0 0.0
      %886 = vmatpush.msra.mxu0 0.0
      %887 = vmatpush.msra.mxu0 0.0
      %888 = vmatpush.msra.mxu0 0.0
      %889 = vmatpush.msra.mxu0 0.0
      %890 = vmatpush.msra.mxu0 0.0
      %891 = vmatpush.msra.mxu0 0.0
      %892 = vmatpush.msra.mxu0 %v875
      %893 = vmatmul.f32.gmra.mxu0 %v834
      %v894 = vpop.f32.mrf.mxu0
      %v895 = vadd.f32 0.0, %v894
      %896 = vmatmul.f32.gmra.mxu0 %v836
      %v897 = vpop.f32.mrf.mxu0
      %v898 = vadd.f32 0.0, %v897
      %899 = vmatmul.f32.gmra.mxu0 %v838
      %v900 = vpop.f32.mrf.mxu0
      %v901 = vadd.f32 0.0, %v900
      %902 = vmatmul.f32.gmra.mxu0 %v840
      %v903 = vpop.f32.mrf.mxu0
      %v904 = vadd.f32 0.0, %v903
      %905 = vmatmul.f32.gmra.mxu0 %v842
      %v906 = vpop.f32.mrf.mxu0
      %v907 = vadd.f32 0.0, %v906
      %908 = vmatmul.f32.gmra.mxu0 %v844
      %v909 = vpop.f32.mrf.mxu0
      %v910 = vadd.f32 0.0, %v909
      %911 = vmatmul.f32.gmra.mxu0 %v846
      %v912 = vpop.f32.mrf.mxu0
      %v913 = vadd.f32 0.0, %v912
      %914 = vmatmul.f32.gmra.mxu0 %v848
      %v915 = vpop.f32.mrf.mxu0
      %v916 = vadd.f32 0.0, %v915
      %917 = vmatmul.f32.gmra.mxu0 %v850
      %v918 = vpop.f32.mrf.mxu0
      %v919 = vadd.f32 0.0, %v918
      %920 = vmatmul.f32.gmra.mxu0 %v852
      %v921 = vpop.f32.mrf.mxu0
      %v922 = vadd.f32 0.0, %v921
      %923 = vmatmul.f32.gmra.mxu0 %v854
      %v924 = vpop.f32.mrf.mxu0
      %v925 = vadd.f32 0.0, %v924
      %926 = vmatmul.f32.gmra.mxu0 %v856
      %v927 = vpop.f32.mrf.mxu0
      %v928 = vadd.f32 0.0, %v927
      %929 = vmatmul.f32.gmra.mxu0 %v858
      %v930 = vpop.f32.mrf.mxu0
      %v931 = vadd.f32 0.0, %v930
      %932 = vmatmul.f32.gmra.mxu0 %v860
      %v933 = vpop.f32.mrf.mxu0
      %v934 = vadd.f32 0.0, %v933
      %935 = vmatmul.f32.gmra.mxu0 %v862
      %v936 = vpop.f32.mrf.mxu0
      %v937 = vadd.f32 0.0, %v936
      %938 = vmatmul.f32.gmra.mxu0 %v864
      %v939 = vpop.f32.mrf.mxu0
      %v940 = vadd.f32 0.0, %v939
      %941 = vmatmul.f32.gmra.mxu0 %v866
      %v942 = vpop.f32.mrf.mxu0
      %v943 = vadd.f32 0.0, %v942
      %944 = vmatmul.f32.gmra.mxu0 %v868
      %v945 = vpop.f32.mrf.mxu0
      %v946 = vadd.f32 0.0, %v945
      %947 = vmatmul.f32.gmra.mxu0 %v870
      %v948 = vpop.f32.mrf.mxu0
      %v949 = vadd.f32 0.0, %v948
      %950 = vmatmul.f32.gmra.mxu0 %v872
      %v951 = vpop.f32.mrf.mxu0
      %v952 = vadd.f32 0.0, %v951
      %953 = vdwg.mxu0
      %v954 = vrot.slane %v293, 2
      %v955 = vsel %vm605, %v645, %v954
      %v956 = vsel %vm361, %v955, 0
      %v959 = vsel %vm402, %v788, 0
      %961 = vmatpush.msra.mxu0 0.0
      %962 = vmatpush.msra.mxu0 0.0
      %963 = vmatpush.msra.mxu0 0.0
      %964 = vmatpush.msra.mxu0 0.0
      %965 = vmatpush.msra.mxu0 0.0
      %966 = vmatpush.msra.mxu0 0.0
      %967 = vmatpush.msra.mxu0 0.0
      %968 = vmatpush.msra.mxu0 0.0
      %969 = vmatpush.msra.mxu0 0.0
      %970 = vmatpush.msra.mxu0 0.0
      %971 = vmatpush.msra.mxu0 0.0
      %972 = vmatpush.msra.mxu0 0.0
      %973 = vmatpush.msra.mxu0 0.0
      %974 = vmatpush.msra.mxu0 0.0
      %975 = vmatpush.msra.mxu0 0.0
      %976 = vmatpush.msra.mxu0 %v959
      %977 = vmatmul.f32.gmra.mxu0 %v649
      %v978 = vpop.f32.mrf.mxu0
      %v979 = vadd.f32 %v895, %v978
      %980 = vmatmul.f32.gmra.mxu0 %v651
      %v981 = vpop.f32.mrf.mxu0
      %v982 = vadd.f32 %v898, %v981
      %983 = vmatmul.f32.gmra.mxu0 %v653
      %v984 = vpop.f32.mrf.mxu0
      %v985 = vadd.f32 %v901, %v984
      %986 = vmatmul.f32.gmra.mxu0 %v655
      %v987 = vpop.f32.mrf.mxu0
      %v988 = vadd.f32 %v904, %v987
      %989 = vmatmul.f32.gmra.mxu0 %v657
      %v990 = vpop.f32.mrf.mxu0
      %v991 = vadd.f32 %v907, %v990
      %992 = vmatmul.f32.gmra.mxu0 %v659
      %v993 = vpop.f32.mrf.mxu0
      %v994 = vadd.f32 %v910, %v993
      %995 = vmatmul.f32.gmra.mxu0 %v661
      %v996 = vpop.f32.mrf.mxu0
      %v997 = vadd.f32 %v913, %v996
      %998 = vmatmul.f32.gmra.mxu0 %v663
      %v999 = vpop.f32.mrf.mxu0
      %v1000 = vadd.f32 %v916, %v999
      %1001 = vmatmul.f32.gmra.mxu0 %v665
      %v1002 = vpop.f32.mrf.mxu0
      %v1003 = vadd.f32 %v919, %v1002
      %1004 = vmatmul.f32.gmra.mxu0 %v667
      %v1005 = vpop.f32.mrf.mxu0
      %v1006 = vadd.f32 %v922, %v1005
      %1007 = vmatmul.f32.gmra.mxu0 %v669
      %v1008 = vpop.f32.mrf.mxu0
      %v1009 = vadd.f32 %v925, %v1008
      %1010 = vmatmul.f32.gmra.mxu0 %v671
      %v1011 = vpop.f32.mrf.mxu0
      %v1012 = vadd.f32 %v928, %v1011
      %1013 = vmatmul.f32.gmra.mxu0 %v673
      %v1014 = vpop.f32.mrf.mxu0
      %v1015 = vadd.f32 %v931, %v1014
      %1016 = vmatmul.f32.gmra.mxu0 %v675
      %v1017 = vpop.f32.mrf.mxu0
      %v1018 = vadd.f32 %v934, %v1017
      %1019 = vmatmul.f32.gmra.mxu0 %v677
      %v1020 = vpop.f32.mrf.mxu0
      %v1021 = vadd.f32 %v937, %v1020
      %1022 = vmatmul.f32.gmra.mxu0 %v679
      %v1023 = vpop.f32.mrf.mxu0
      %v1024 = vadd.f32 %v940, %v1023
      %1025 = vmatmul.f32.gmra.mxu0 %v681
      %v1026 = vpop.f32.mrf.mxu0
      %v1027 = vadd.f32 %v943, %v1026
      %1028 = vmatmul.f32.gmra.mxu0 %v683
      %v1029 = vpop.f32.mrf.mxu0
      %v1030 = vadd.f32 %v946, %v1029
      %1031 = vmatmul.f32.gmra.mxu0 %v685
      %v1032 = vpop.f32.mrf.mxu0
      %v1033 = vadd.f32 %v949, %v1032
      %1034 = vmatmul.f32.gmra.mxu0 %v956
      %v1035 = vpop.f32.mrf.mxu0
      %v1036 = vadd.f32 %v952, %v1035
      %1037 = vdwg.mxu0
      %s1038 = scalar_lea.vmem %s255, 20
      %v1039 = vld [vmem:[%s1038] sm:$0xf]
      %v1040 = vrot.slane %v273, 4
      %v1041 = vrot.slane %v274, 4
      %v1042 = vsel %vm402, %v1040, %v1041
      %v1043 = vrot.slane %v275, 4
      %v1044 = vsel %vm402, %v1041, %v1043
      %v1045 = vrot.slane %v276, 4
      %v1046 = vsel %vm402, %v1043, %v1045
      %v1047 = vrot.slane %v277, 4
      %v1048 = vsel %vm402, %v1045, %v1047
      %v1049 = vrot.slane %v278, 4
      %v1050 = vsel %vm402, %v1047, %v1049
      %v1051 = vrot.slane %v279, 4
      %v1052 = vsel %vm402, %v1049, %v1051
      %v1053 = vrot.slane %v280, 4
      %v1054 = vsel %vm402, %v1051, %v1053
      %v1055 = vrot.slane %v281, 4
      %v1056 = vsel %vm402, %v1053, %v1055
      %v1057 = vrot.slane %v282, 4
      %v1058 = vsel %vm402, %v1055, %v1057
      %v1059 = vrot.slane %v283, 4
      %v1060 = vsel %vm402, %v1057, %v1059
      %v1061 = vrot.slane %v284, 4
      %v1062 = vsel %vm402, %v1059, %v1061
      %v1063 = vrot.slane %v285, 4
      %v1064 = vsel %vm402, %v1061, %v1063
      %v1065 = vrot.slane %v286, 4
      %v1066 = vsel %vm402, %v1063, %v1065
      %v1067 = vrot.slane %v287, 4
      %v1068 = vsel %vm402, %v1065, %v1067
      %v1069 = vrot.slane %v288, 4
      %v1070 = vsel %vm402, %v1067, %v1069
      %v1071 = vrot.slane %v289, 4
      %v1072 = vsel %vm402, %v1069, %v1071
      %v1073 = vrot.slane %v290, 4
      %v1074 = vsel %vm402, %v1071, %v1073
      %v1075 = vrot.slane %v291, 4
      %v1076 = vsel %vm402, %v1073, %v1075
      %v1077 = vrot.slane %v292, 4
      %v1078 = vsel %vm402, %v1075, %v1077
      %v1079 = vrot.slane %v293, 4
      %v1080 = vsel %vm402, %v1077, %v1079
      %v1081 = vsel %vm361, %v1042, 0
      %v1083 = vsel %vm361, %v1044, 0
      %v1085 = vsel %vm361, %v1046, 0
      %v1087 = vsel %vm361, %v1048, 0
      %v1089 = vsel %vm361, %v1050, 0
      %v1091 = vsel %vm361, %v1052, 0
      %v1093 = vsel %vm361, %v1054, 0
      %v1095 = vsel %vm361, %v1056, 0
      %v1097 = vsel %vm361, %v1058, 0
      %v1099 = vsel %vm361, %v1060, 0
      %v1101 = vsel %vm361, %v1062, 0
      %v1103 = vsel %vm361, %v1064, 0
      %v1105 = vsel %vm361, %v1066, 0
      %v1107 = vsel %vm361, %v1068, 0
      %v1109 = vsel %vm361, %v1070, 0
      %v1111 = vsel %vm361, %v1072, 0
      %v1113 = vsel %vm361, %v1074, 0
      %v1115 = vsel %vm361, %v1076, 0
      %v1117 = vsel %vm361, %v1078, 0
      %v1119 = vsel %vm361, %v1080, 0
      %v1122 = vsel %vm402, %v1039, 0
      %1124 = vmatpush.msra.mxu0 0.0
      %1125 = vmatpush.msra.mxu0 0.0
      %1126 = vmatpush.msra.mxu0 0.0
      %1127 = vmatpush.msra.mxu0 0.0
      %1128 = vmatpush.msra.mxu0 0.0
      %1129 = vmatpush.msra.mxu0 0.0
      %1130 = vmatpush.msra.mxu0 0.0
      %1131 = vmatpush.msra.mxu0 0.0
      %1132 = vmatpush.msra.mxu0 0.0
      %1133 = vmatpush.msra.mxu0 0.0
      %1134 = vmatpush.msra.mxu0 0.0
      %1135 = vmatpush.msra.mxu0 0.0
      %1136 = vmatpush.msra.mxu0 0.0
      %1137 = vmatpush.msra.mxu0 0.0
      %1138 = vmatpush.msra.mxu0 0.0
      %1139 = vmatpush.msra.mxu0 %v1122
      %1140 = vmatmul.f32.gmra.mxu0 %v1081
      %v1141 = vpop.f32.mrf.mxu0
      %v1142 = vadd.f32 0.0, %v1141
      %1143 = vmatmul.f32.gmra.mxu0 %v1083
      %v1144 = vpop.f32.mrf.mxu0
      %v1145 = vadd.f32 0.0, %v1144
      %1146 = vmatmul.f32.gmra.mxu0 %v1085
      %v1147 = vpop.f32.mrf.mxu0
      %v1148 = vadd.f32 0.0, %v1147
      %1149 = vmatmul.f32.gmra.mxu0 %v1087
      %v1150 = vpop.f32.mrf.mxu0
      %v1151 = vadd.f32 0.0, %v1150
      %1152 = vmatmul.f32.gmra.mxu0 %v1089
      %v1153 = vpop.f32.mrf.mxu0
      %v1154 = vadd.f32 0.0, %v1153
      %1155 = vmatmul.f32.gmra.mxu0 %v1091
      %v1156 = vpop.f32.mrf.mxu0
      %v1157 = vadd.f32 0.0, %v1156
      %1158 = vmatmul.f32.gmra.mxu0 %v1093
      %v1159 = vpop.f32.mrf.mxu0
      %v1160 = vadd.f32 0.0, %v1159
      %1161 = vmatmul.f32.gmra.mxu0 %v1095
      %v1162 = vpop.f32.mrf.mxu0
      %v1163 = vadd.f32 0.0, %v1162
      %1164 = vmatmul.f32.gmra.mxu0 %v1097
      %v1165 = vpop.f32.mrf.mxu0
      %v1166 = vadd.f32 0.0, %v1165
      %1167 = vmatmul.f32.gmra.mxu0 %v1099
      %v1168 = vpop.f32.mrf.mxu0
      %v1169 = vadd.f32 0.0, %v1168
      %1170 = vmatmul.f32.gmra.mxu0 %v1101
      %v1171 = vpop.f32.mrf.mxu0
      %v1172 = vadd.f32 0.0, %v1171
      %1173 = vmatmul.f32.gmra.mxu0 %v1103
      %v1174 = vpop.f32.mrf.mxu0
      %v1175 = vadd.f32 0.0, %v1174
      %1176 = vmatmul.f32.gmra.mxu0 %v1105
      %v1177 = vpop.f32.mrf.mxu0
      %v1178 = vadd.f32 0.0, %v1177
      %1179 = vmatmul.f32.gmra.mxu0 %v1107
      %v1180 = vpop.f32.mrf.mxu0
      %v1181 = vadd.f32 0.0, %v1180
      %1182 = vmatmul.f32.gmra.mxu0 %v1109
      %v1183 = vpop.f32.mrf.mxu0
      %v1184 = vadd.f32 0.0, %v1183
      %1185 = vmatmul.f32.gmra.mxu0 %v1111
      %v1186 = vpop.f32.mrf.mxu0
      %v1187 = vadd.f32 0.0, %v1186
      %1188 = vmatmul.f32.gmra.mxu0 %v1113
      %v1189 = vpop.f32.mrf.mxu0
      %v1190 = vadd.f32 0.0, %v1189
      %1191 = vmatmul.f32.gmra.mxu0 %v1115
      %v1192 = vpop.f32.mrf.mxu0
      %v1193 = vadd.f32 0.0, %v1192
      %1194 = vmatmul.f32.gmra.mxu0 %v1117
      %v1195 = vpop.f32.mrf.mxu0
      %v1196 = vadd.f32 0.0, %v1195
      %1197 = vmatmul.f32.gmra.mxu0 %v1119
      %v1198 = vpop.f32.mrf.mxu0
      %v1199 = vadd.f32 0.0, %v1198
      %1200 = vdwg.mxu0
      %v1201 = vadd.f32 %v979, %v1142
      %v1202 = vadd.f32 %v982, %v1145
      %v1203 = vadd.f32 %v985, %v1148
      %v1204 = vadd.f32 %v988, %v1151
      %v1205 = vadd.f32 %v991, %v1154
      %v1206 = vadd.f32 %v994, %v1157
      %v1207 = vadd.f32 %v997, %v1160
      %v1208 = vadd.f32 %v1000, %v1163
      %v1209 = vadd.f32 %v1003, %v1166
      %v1210 = vadd.f32 %v1006, %v1169
      %v1211 = vadd.f32 %v1009, %v1172
      %v1212 = vadd.f32 %v1012, %v1175
      %v1213 = vadd.f32 %v1015, %v1178
      %v1214 = vadd.f32 %v1018, %v1181
      %v1215 = vadd.f32 %v1021, %v1184
      %v1216 = vadd.f32 %v1024, %v1187
      %v1217 = vadd.f32 %v1027, %v1190
      %v1218 = vadd.f32 %v1030, %v1193
      %v1219 = vadd.f32 %v1033, %v1196
      %v1220 = vadd.f32 %v1036, %v1199
      %s1221 = scalar_lea.vmem %s255, 24
      %v1222 = vld [vmem:[%s1221] sm:$0xf]
      %s1223 = scalar_lea.vmem %s255, 28
      %v1224 = vld [vmem:[%s1223] sm:$0xf]
      %vm1226 = vcmask 1042432
      %v1227 = vrot.slane %v274, 5
      %v1228 = vrot.slane %v275, 5
      %v1229 = vsel %vm1226, %v1227, %v1228
      %v1230 = vrot.slane %v276, 5
      %v1231 = vsel %vm1226, %v1228, %v1230
      %v1232 = vrot.slane %v277, 5
      %v1233 = vsel %vm1226, %v1230, %v1232
      %v1234 = vrot.slane %v278, 5
      %v1235 = vsel %vm1226, %v1232, %v1234
      %v1236 = vrot.slane %v279, 5
      %v1237 = vsel %vm1226, %v1234, %v1236
      %v1238 = vrot.slane %v280, 5
      %v1239 = vsel %vm1226, %v1236, %v1238
      %v1240 = vrot.slane %v281, 5
      %v1241 = vsel %vm1226, %v1238, %v1240
      %v1242 = vrot.slane %v282, 5
      %v1243 = vsel %vm1226, %v1240, %v1242
      %v1244 = vrot.slane %v283, 5
      %v1245 = vsel %vm1226, %v1242, %v1244
      %v1246 = vrot.slane %v284, 5
      %v1247 = vsel %vm1226, %v1244, %v1246
      %v1248 = vrot.slane %v285, 5
      %v1249 = vsel %vm1226, %v1246, %v1248
      %v1250 = vrot.slane %v286, 5
      %v1251 = vsel %vm1226, %v1248, %v1250
      %v1252 = vrot.slane %v287, 5
      %v1253 = vsel %vm1226, %v1250, %v1252
      %v1254 = vrot.slane %v288, 5
      %v1255 = vsel %vm1226, %v1252, %v1254
      %v1256 = vrot.slane %v289, 5
      %v1257 = vsel %vm1226, %v1254, %v1256
      %v1258 = vrot.slane %v290, 5
      %v1259 = vsel %vm1226, %v1256, %v1258
      %v1260 = vrot.slane %v291, 5
      %v1261 = vsel %vm1226, %v1258, %v1260
      %v1262 = vrot.slane %v292, 5
      %v1263 = vsel %vm1226, %v1260, %v1262
      %v1264 = vrot.slane %v293, 5
      %v1265 = vsel %vm1226, %v1262, %v1264
      %v1266 = vrot.slane %v294, 5
      %v1267 = vsel %vm1226, %v1264, %v1266
      %v1268 = vsel %vm361, %v1229, 0
      %v1270 = vsel %vm361, %v1231, 0
      %v1272 = vsel %vm361, %v1233, 0
      %v1274 = vsel %vm361, %v1235, 0
      %v1276 = vsel %vm361, %v1237, 0
      %v1278 = vsel %vm361, %v1239, 0
      %v1280 = vsel %vm361, %v1241, 0
      %v1282 = vsel %vm361, %v1243, 0
      %v1284 = vsel %vm361, %v1245, 0
      %v1286 = vsel %vm361, %v1247, 0
      %v1288 = vsel %vm361, %v1249, 0
      %v1290 = vsel %vm361, %v1251, 0
      %v1292 = vsel %vm361, %v1253, 0
      %v1294 = vsel %vm361, %v1255, 0
      %v1296 = vsel %vm361, %v1257, 0
      %v1298 = vsel %vm361, %v1259, 0
      %v1300 = vsel %vm361, %v1261, 0
      %v1302 = vsel %vm361, %v1263, 0
      %v1304 = vsel %vm361, %v1265, 0
      %v1306 = vsel %vm361, %v1267, 0
      %v1309 = vsel %vm402, %v1224, 0
      %1311 = vmatpush.msra.mxu0 0.0
      %1312 = vmatpush.msra.mxu0 0.0
      %1313 = vmatpush.msra.mxu0 0.0
      %1314 = vmatpush.msra.mxu0 0.0
      %1315 = vmatpush.msra.mxu0 0.0
      %1316 = vmatpush.msra.mxu0 0.0
      %1317 = vmatpush.msra.mxu0 0.0
      %1318 = vmatpush.msra.mxu0 0.0
      %1319 = vmatpush.msra.mxu0 0.0
      %1320 = vmatpush.msra.mxu0 0.0
      %1321 = vmatpush.msra.mxu0 0.0
      %1322 = vmatpush.msra.mxu0 0.0
      %1323 = vmatpush.msra.mxu0 0.0
      %1324 = vmatpush.msra.mxu0 0.0
      %1325 = vmatpush.msra.mxu0 0.0
      %1326 = vmatpush.msra.mxu0 %v1309
      %1327 = vmatmul.f32.gmra.mxu0 %v1268
      %v1328 = vpop.f32.mrf.mxu0
      %v1329 = vadd.f32 0.0, %v1328
      %1330 = vmatmul.f32.gmra.mxu0 %v1270
      %v1331 = vpop.f32.mrf.mxu0
      %v1332 = vadd.f32 0.0, %v1331
      %1333 = vmatmul.f32.gmra.mxu0 %v1272
      %v1334 = vpop.f32.mrf.mxu0
      %v1335 = vadd.f32 0.0, %v1334
      %1336 = vmatmul.f32.gmra.mxu0 %v1274
      %v1337 = vpop.f32.mrf.mxu0
      %v1338 = vadd.f32 0.0, %v1337
      %1339 = vmatmul.f32.gmra.mxu0 %v1276
      %v1340 = vpop.f32.mrf.mxu0
      %v1341 = vadd.f32 0.0, %v1340
      %1342 = vmatmul.f32.gmra.mxu0 %v1278
      %v1343 = vpop.f32.mrf.mxu0
      %v1344 = vadd.f32 0.0, %v1343
      %1345 = vmatmul.f32.gmra.mxu0 %v1280
      %v1346 = vpop.f32.mrf.mxu0
      %v1347 = vadd.f32 0.0, %v1346
      %1348 = vmatmul.f32.gmra.mxu0 %v1282
      %v1349 = vpop.f32.mrf.mxu0
      %v1350 = vadd.f32 0.0, %v1349
      %1351 = vmatmul.f32.gmra.mxu0 %v1284
      %v1352 = vpop.f32.mrf.mxu0
      %v1353 = vadd.f32 0.0, %v1352
      %1354 = vmatmul.f32.gmra.mxu0 %v1286
      %v1355 = vpop.f32.mrf.mxu0
      %v1356 = vadd.f32 0.0, %v1355
      %1357 = vmatmul.f32.gmra.mxu0 %v1288
      %v1358 = vpop.f32.mrf.mxu0
      %v1359 = vadd.f32 0.0, %v1358
      %1360 = vmatmul.f32.gmra.mxu0 %v1290
      %v1361 = vpop.f32.mrf.mxu0
      %v1362 = vadd.f32 0.0, %v1361
      %1363 = vmatmul.f32.gmra.mxu0 %v1292
      %v1364 = vpop.f32.mrf.mxu0
      %v1365 = vadd.f32 0.0, %v1364
      %1366 = vmatmul.f32.gmra.mxu0 %v1294
      %v1367 = vpop.f32.mrf.mxu0
      %v1368 = vadd.f32 0.0, %v1367
      %1369 = vmatmul.f32.gmra.mxu0 %v1296
      %v1370 = vpop.f32.mrf.mxu0
      %v1371 = vadd.f32 0.0, %v1370
      %1372 = vmatmul.f32.gmra.mxu0 %v1298
      %v1373 = vpop.f32.mrf.mxu0
      %v1374 = vadd.f32 0.0, %v1373
      %1375 = vmatmul.f32.gmra.mxu0 %v1300
      %v1376 = vpop.f32.mrf.mxu0
      %v1377 = vadd.f32 0.0, %v1376
      %1378 = vmatmul.f32.gmra.mxu0 %v1302
      %v1379 = vpop.f32.mrf.mxu0
      %v1380 = vadd.f32 0.0, %v1379
      %1381 = vmatmul.f32.gmra.mxu0 %v1304
      %v1382 = vpop.f32.mrf.mxu0
      %v1383 = vadd.f32 0.0, %v1382
      %1384 = vmatmul.f32.gmra.mxu0 %v1306
      %v1385 = vpop.f32.mrf.mxu0
      %v1386 = vadd.f32 0.0, %v1385
      %1387 = vdwg.mxu0
      %v1388 = vrot.slane %v294, 4
      %v1389 = vsel %vm402, %v1079, %v1388
      %v1390 = vsel %vm361, %v1389, 0
      %v1393 = vsel %vm402, %v1222, 0
      %1395 = vmatpush.msra.mxu0 0.0
      %1396 = vmatpush.msra.mxu0 0.0
      %1397 = vmatpush.msra.mxu0 0.0
      %1398 = vmatpush.msra.mxu0 0.0
      %1399 = vmatpush.msra.mxu0 0.0
      %1400 = vmatpush.msra.mxu0 0.0
      %1401 = vmatpush.msra.mxu0 0.0
      %1402 = vmatpush.msra.mxu0 0.0
      %1403 = vmatpush.msra.mxu0 0.0
      %1404 = vmatpush.msra.mxu0 0.0
      %1405 = vmatpush.msra.mxu0 0.0
      %1406 = vmatpush.msra.mxu0 0.0
      %1407 = vmatpush.msra.mxu0 0.0
      %1408 = vmatpush.msra.mxu0 0.0
      %1409 = vmatpush.msra.mxu0 0.0
      %1410 = vmatpush.msra.mxu0 %v1393
      %1411 = vmatmul.f32.gmra.mxu0 %v1083
      %v1412 = vpop.f32.mrf.mxu0
      %v1413 = vadd.f32 %v1329, %v1412
      %1414 = vmatmul.f32.gmra.mxu0 %v1085
      %v1415 = vpop.f32.mrf.mxu0
      %v1416 = vadd.f32 %v1332, %v1415
      %1417 = vmatmul.f32.gmra.mxu0 %v1087
      %v1418 = vpop.f32.mrf.mxu0
      %v1419 = vadd.f32 %v1335, %v1418
      %1420 = vmatmul.f32.gmra.mxu0 %v1089
      %v1421 = vpop.f32.mrf.mxu0
      %v1422 = vadd.f32 %v1338, %v1421
      %1423 = vmatmul.f32.gmra.mxu0 %v1091
      %v1424 = vpop.f32.mrf.mxu0
      %v1425 = vadd.f32 %v1341, %v1424
      %1426 = vmatmul.f32.gmra.mxu0 %v1093
      %v1427 = vpop.f32.mrf.mxu0
      %v1428 = vadd.f32 %v1344, %v1427
      %1429 = vmatmul.f32.gmra.mxu0 %v1095
      %v1430 = vpop.f32.mrf.mxu0
      %v1431 = vadd.f32 %v1347, %v1430
      %1432 = vmatmul.f32.gmra.mxu0 %v1097
      %v1433 = vpop.f32.mrf.mxu0
      %v1434 = vadd.f32 %v1350, %v1433
      %1435 = vmatmul.f32.gmra.mxu0 %v1099
      %v1436 = vpop.f32.mrf.mxu0
      %v1437 = vadd.f32 %v1353, %v1436
      %1438 = vmatmul.f32.gmra.mxu0 %v1101
      %v1439 = vpop.f32.mrf.mxu0
      %v1440 = vadd.f32 %v1356, %v1439
      %1441 = vmatmul.f32.gmra.mxu0 %v1103
      %v1442 = vpop.f32.mrf.mxu0
      %v1443 = vadd.f32 %v1359, %v1442
      %1444 = vmatmul.f32.gmra.mxu0 %v1105
      %v1445 = vpop.f32.mrf.mxu0
      %v1446 = vadd.f32 %v1362, %v1445
      %1447 = vmatmul.f32.gmra.mxu0 %v1107
      %v1448 = vpop.f32.mrf.mxu0
      %v1449 = vadd.f32 %v1365, %v1448
      %1450 = vmatmul.f32.gmra.mxu0 %v1109
      %v1451 = vpop.f32.mrf.mxu0
      %v1452 = vadd.f32 %v1368, %v1451
      %1453 = vmatmul.f32.gmra.mxu0 %v1111
      %v1454 = vpop.f32.mrf.mxu0
      %v1455 = vadd.f32 %v1371, %v1454
      %1456 = vmatmul.f32.gmra.mxu0 %v1113
      %v1457 = vpop.f32.mrf.mxu0
      %v1458 = vadd.f32 %v1374, %v1457
      %1459 = vmatmul.f32.gmra.mxu0 %v1115
      %v1460 = vpop.f32.mrf.mxu0
      %v1461 = vadd.f32 %v1377, %v1460
      %1462 = vmatmul.f32.gmra.mxu0 %v1117
      %v1463 = vpop.f32.mrf.mxu0
      %v1464 = vadd.f32 %v1380, %v1463
      %1465 = vmatmul.f32.gmra.mxu0 %v1119
      %v1466 = vpop.f32.mrf.mxu0
      %v1467 = vadd.f32 %v1383, %v1466
      %1468 = vmatmul.f32.gmra.mxu0 %v1390
      %v1469 = vpop.f32.mrf.mxu0
      %v1470 = vadd.f32 %v1386, %v1469
      %1471 = vdwg.mxu0
      %s1472 = scalar_lea.vmem %s255, 32
      %v1473 = vld [vmem:[%s1472] sm:$0xf]
      %vm1474 = vcmask 1041408
      %v1475 = vrot.slane %v274, 6
      %v1476 = vrot.slane %v275, 6
      %v1477 = vsel %vm1474, %v1475, %v1476
      %v1478 = vrot.slane %v276, 6
      %v1479 = vsel %vm1474, %v1476, %v1478
      %v1480 = vrot.slane %v277, 6
      %v1481 = vsel %vm1474, %v1478, %v1480
      %v1482 = vrot.slane %v278, 6
      %v1483 = vsel %vm1474, %v1480, %v1482
      %v1484 = vrot.slane %v279, 6
      %v1485 = vsel %vm1474, %v1482, %v1484
      %v1486 = vrot.slane %v280, 6
      %v1487 = vsel %vm1474, %v1484, %v1486
      %v1488 = vrot.slane %v281, 6
      %v1489 = vsel %vm1474, %v1486, %v1488
      %v1490 = vrot.slane %v282, 6
      %v1491 = vsel %vm1474, %v1488, %v1490
      %v1492 = vrot.slane %v283, 6
      %v1493 = vsel %vm1474, %v1490, %v1492
      %v1494 = vrot.slane %v284, 6
      %v1495 = vsel %vm1474, %v1492, %v1494
      %v1496 = vrot.slane %v285, 6
      %v1497 = vsel %vm1474, %v1494, %v1496
      %v1498 = vrot.slane %v286, 6
      %v1499 = vsel %vm1474, %v1496, %v1498
      %v1500 = vrot.slane %v287, 6
      %v1501 = vsel %vm1474, %v1498, %v1500
      %v1502 = vrot.slane %v288, 6
      %v1503 = vsel %vm1474, %v1500, %v1502
      %v1504 = vrot.slane %v289, 6
      %v1505 = vsel %vm1474, %v1502, %v1504
      %v1506 = vrot.slane %v290, 6
      %v1507 = vsel %vm1474, %v1504, %v1506
      %v1508 = vrot.slane %v291, 6
      %v1509 = vsel %vm1474, %v1506, %v1508
      %v1510 = vrot.slane %v292, 6
      %v1511 = vsel %vm1474, %v1508, %v1510
      %v1512 = vrot.slane %v293, 6
      %v1513 = vsel %vm1474, %v1510, %v1512
      %v1514 = vrot.slane %v294, 6
      %v1515 = vsel %vm1474, %v1512, %v1514
      %v1516 = vsel %vm361, %v1477, 0
      %v1518 = vsel %vm361, %v1479, 0
      %v1520 = vsel %vm361, %v1481, 0
      %v1522 = vsel %vm361, %v1483, 0
      %v1524 = vsel %vm361, %v1485, 0
      %v1526 = vsel %vm361, %v1487, 0
      %v1528 = vsel %vm361, %v1489, 0
      %v1530 = vsel %vm361, %v1491, 0
      %v1532 = vsel %vm361, %v1493, 0
      %v1534 = vsel %vm361, %v1495, 0
      %v1536 = vsel %vm361, %v1497, 0
      %v1538 = vsel %vm361, %v1499, 0
      %v1540 = vsel %vm361, %v1501, 0
      %v1542 = vsel %vm361, %v1503, 0
      %v1544 = vsel %vm361, %v1505, 0
      %v1546 = vsel %vm361, %v1507, 0
      %v1548 = vsel %vm361, %v1509, 0
      %v1550 = vsel %vm361, %v1511, 0
      %v1552 = vsel %vm361, %v1513, 0
      %v1554 = vsel %vm361, %v1515, 0
      %v1557 = vsel %vm402, %v1473, 0
      %1559 = vmatpush.msra.mxu0 0.0
      %1560 = vmatpush.msra.mxu0 0.0
      %1561 = vmatpush.msra.mxu0 0.0
      %1562 = vmatpush.msra.mxu0 0.0
      %1563 = vmatpush.msra.mxu0 0.0
      %1564 = vmatpush.msra.mxu0 0.0
      %1565 = vmatpush.msra.mxu0 0.0
      %1566 = vmatpush.msra.mxu0 0.0
      %1567 = vmatpush.msra.mxu0 0.0
      %1568 = vmatpush.msra.mxu0 0.0
      %1569 = vmatpush.msra.mxu0 0.0
      %1570 = vmatpush.msra.mxu0 0.0
      %1571 = vmatpush.msra.mxu0 0.0
      %1572 = vmatpush.msra.mxu0 0.0
      %1573 = vmatpush.msra.mxu0 0.0
      %1574 = vmatpush.msra.mxu0 %v1557
      %1575 = vmatmul.f32.gmra.mxu0 %v1516
      %v1576 = vpop.f32.mrf.mxu0
      %v1577 = vadd.f32 0.0, %v1576
      %1578 = vmatmul.f32.gmra.mxu0 %v1518
      %v1579 = vpop.f32.mrf.mxu0
      %v1580 = vadd.f32 0.0, %v1579
      %1581 = vmatmul.f32.gmra.mxu0 %v1520
      %v1582 = vpop.f32.mrf.mxu0
      %v1583 = vadd.f32 0.0, %v1582
      %1584 = vmatmul.f32.gmra.mxu0 %v1522
      %v1585 = vpop.f32.mrf.mxu0
      %v1586 = vadd.f32 0.0, %v1585
      %1587 = vmatmul.f32.gmra.mxu0 %v1524
      %v1588 = vpop.f32.mrf.mxu0
      %v1589 = vadd.f32 0.0, %v1588
      %1590 = vmatmul.f32.gmra.mxu0 %v1526
      %v1591 = vpop.f32.mrf.mxu0
      %v1592 = vadd.f32 0.0, %v1591
      %1593 = vmatmul.f32.gmra.mxu0 %v1528
      %v1594 = vpop.f32.mrf.mxu0
      %v1595 = vadd.f32 0.0, %v1594
      %1596 = vmatmul.f32.gmra.mxu0 %v1530
      %v1597 = vpop.f32.mrf.mxu0
      %v1598 = vadd.f32 0.0, %v1597
      %1599 = vmatmul.f32.gmra.mxu0 %v1532
      %v1600 = vpop.f32.mrf.mxu0
      %v1601 = vadd.f32 0.0, %v1600
      %1602 = vmatmul.f32.gmra.mxu0 %v1534
      %v1603 = vpop.f32.mrf.mxu0
      %v1604 = vadd.f32 0.0, %v1603
      %1605 = vmatmul.f32.gmra.mxu0 %v1536
      %v1606 = vpop.f32.mrf.mxu0
      %v1607 = vadd.f32 0.0, %v1606
      %1608 = vmatmul.f32.gmra.mxu0 %v1538
      %v1609 = vpop.f32.mrf.mxu0
      %v1610 = vadd.f32 0.0, %v1609
      %1611 = vmatmul.f32.gmra.mxu0 %v1540
      %v1612 = vpop.f32.mrf.mxu0
      %v1613 = vadd.f32 0.0, %v1612
      %1614 = vmatmul.f32.gmra.mxu0 %v1542
      %v1615 = vpop.f32.mrf.mxu0
      %v1616 = vadd.f32 0.0, %v1615
      %1617 = vmatmul.f32.gmra.mxu0 %v1544
      %v1618 = vpop.f32.mrf.mxu0
      %v1619 = vadd.f32 0.0, %v1618
      %1620 = vmatmul.f32.gmra.mxu0 %v1546
      %v1621 = vpop.f32.mrf.mxu0
      %v1622 = vadd.f32 0.0, %v1621
      %1623 = vmatmul.f32.gmra.mxu0 %v1548
      %v1624 = vpop.f32.mrf.mxu0
      %v1625 = vadd.f32 0.0, %v1624
      %1626 = vmatmul.f32.gmra.mxu0 %v1550
      %v1627 = vpop.f32.mrf.mxu0
      %v1628 = vadd.f32 0.0, %v1627
      %1629 = vmatmul.f32.gmra.mxu0 %v1552
      %v1630 = vpop.f32.mrf.mxu0
      %v1631 = vadd.f32 0.0, %v1630
      %1632 = vmatmul.f32.gmra.mxu0 %v1554
      %v1633 = vpop.f32.mrf.mxu0
      %v1634 = vadd.f32 0.0, %v1633
      %1635 = vdwg.mxu0
      %v1636 = vadd.f32 %v1413, %v1577
      %v1637 = vadd.f32 %v1416, %v1580
      %v1638 = vadd.f32 %v1419, %v1583
      %v1639 = vadd.f32 %v1422, %v1586
      %v1640 = vadd.f32 %v1425, %v1589
      %v1641 = vadd.f32 %v1428, %v1592
      %v1642 = vadd.f32 %v1431, %v1595
      %v1643 = vadd.f32 %v1434, %v1598
      %v1644 = vadd.f32 %v1437, %v1601
      %v1645 = vadd.f32 %v1440, %v1604
      %v1646 = vadd.f32 %v1443, %v1607
      %v1647 = vadd.f32 %v1446, %v1610
      %v1648 = vadd.f32 %v1449, %v1613
      %v1649 = vadd.f32 %v1452, %v1616
      %v1650 = vadd.f32 %v1455, %v1619
      %v1651 = vadd.f32 %v1458, %v1622
      %v1652 = vadd.f32 %v1461, %v1625
      %v1653 = vadd.f32 %v1464, %v1628
      %v1654 = vadd.f32 %v1467, %v1631
      %v1655 = vadd.f32 %v1470, %v1634
      %v1656 = vadd.f32 %v767, %v1201
      %v1657 = vadd.f32 %v768, %v1202
      %v1658 = vadd.f32 %v769, %v1203
      %v1659 = vadd.f32 %v770, %v1204
      %v1660 = vadd.f32 %v771, %v1205
      %v1661 = vadd.f32 %v772, %v1206
      %v1662 = vadd.f32 %v773, %v1207
      %v1663 = vadd.f32 %v774, %v1208
      %v1664 = vadd.f32 %v775, %v1209
      %v1665 = vadd.f32 %v776, %v1210
      %v1666 = vadd.f32 %v777, %v1211
      %v1667 = vadd.f32 %v778, %v1212
      %v1668 = vadd.f32 %v779, %v1213
      %v1669 = vadd.f32 %v780, %v1214
      %v1670 = vadd.f32 %v781, %v1215
      %v1671 = vadd.f32 %v782, %v1216
      %v1672 = vadd.f32 %v783, %v1217
      %v1673 = vadd.f32 %v784, %v1218
      %v1674 = vadd.f32 %v785, %v1219
      %v1675 = vadd.f32 %v786, %v1220
      %v1676 = vadd.f32 %v1656, %v1636
      %v1677 = vadd.f32 %v1657, %v1637
      %v1678 = vadd.f32 %v1658, %v1638
      %v1679 = vadd.f32 %v1659, %v1639
      %v1680 = vadd.f32 %v1660, %v1640
      %v1681 = vadd.f32 %v1661, %v1641
      %v1682 = vadd.f32 %v1662, %v1642
      %v1683 = vadd.f32 %v1663, %v1643
      %v1684 = vadd.f32 %v1664, %v1644
      %v1685 = vadd.f32 %v1665, %v1645
      %v1686 = vadd.f32 %v1666, %v1646
      %v1687 = vadd.f32 %v1667, %v1647
      %v1688 = vadd.f32 %v1668, %v1648
      %v1689 = vadd.f32 %v1669, %v1649
      %v1690 = vadd.f32 %v1670, %v1650
      %v1691 = vadd.f32 %v1671, %v1651
      %v1692 = vadd.f32 %v1672, %v1652
      %v1693 = vadd.f32 %v1673, %v1653
      %v1694 = vadd.f32 %v1674, %v1654
      %v1695 = vadd.f32 %v1675, %v1655
      %v1696 = vld [vmem:[%s258] sm:$0x1]
      %v1698 = vperm.slane %v1696, 0
      %v1700 = vadd.f32 %v1676, %v1698
      %v1701 = vadd.f32 %v1677, %v1698
      %v1702 = vadd.f32 %v1678, %v1698
      %v1703 = vadd.f32 %v1679, %v1698
      %v1704 = vadd.f32 %v1680, %v1698
      %v1705 = vadd.f32 %v1681, %v1698
      %v1706 = vadd.f32 %v1682, %v1698
      %v1707 = vadd.f32 %v1683, %v1698
      %v1708 = vadd.f32 %v1684, %v1698
      %v1709 = vadd.f32 %v1685, %v1698
      %v1710 = vadd.f32 %v1686, %v1698
      %v1711 = vadd.f32 %v1687, %v1698
      %v1712 = vadd.f32 %v1688, %v1698
      %v1713 = vadd.f32 %v1689, %v1698
      %v1714 = vadd.f32 %v1690, %v1698
      %v1715 = vadd.f32 %v1691, %v1698
      %v1716 = vadd.f32 %v1692, %v1698
      %v1717 = vadd.f32 %v1693, %v1698
      %v1718 = vadd.f32 %v1694, %v1698
      %v1719 = vadd.f32 %v1695, %v1698
      %v1720 = vxor.u32 %v1700, 2147483648
      %v1721 = vxor.u32 %v1701, 2147483648
      %v1722 = vxor.u32 %v1702, 2147483648
      %v1723 = vxor.u32 %v1703, 2147483648
      %v1724 = vxor.u32 %v1704, 2147483648
      %v1725 = vxor.u32 %v1705, 2147483648
      %v1726 = vxor.u32 %v1706, 2147483648
      %v1727 = vxor.u32 %v1707, 2147483648
      %v1728 = vxor.u32 %v1708, 2147483648
      %v1729 = vxor.u32 %v1709, 2147483648
      %v1730 = vxor.u32 %v1710, 2147483648
      %v1731 = vxor.u32 %v1711, 2147483648
      %v1732 = vxor.u32 %v1712, 2147483648
      %v1733 = vxor.u32 %v1713, 2147483648
      %v1734 = vxor.u32 %v1714, 2147483648
      %v1735 = vxor.u32 %v1715, 2147483648
      %v1736 = vxor.u32 %v1716, 2147483648
      %v1737 = vxor.u32 %v1717, 2147483648
      %v1738 = vxor.u32 %v1718, 2147483648
      %v1739 = vxor.u32 %v1719, 2147483648
      %v1740 = vmul.f32 %v1720, 1.442695
      %v1741 = vpow.pop %v1740
      %v1742 = vmul.f32 %v1721, 1.442695
      %v1743 = vpow.pop %v1742
      %v1744 = vmul.f32 %v1722, 1.442695
      %v1745 = vpow.pop %v1744
      %v1746 = vmul.f32 %v1723, 1.442695
      %v1747 = vpow.pop %v1746
      %v1748 = vmul.f32 %v1724, 1.442695
      %v1749 = vpow.pop %v1748
      %v1750 = vmul.f32 %v1725, 1.442695
      %v1751 = vpow.pop %v1750
      %v1752 = vmul.f32 %v1726, 1.442695
      %v1753 = vpow.pop %v1752
      %v1754 = vmul.f32 %v1727, 1.442695
      %v1755 = vpow.pop %v1754
      %v1756 = vmul.f32 %v1728, 1.442695
      %v1757 = vpow.pop %v1756
      %v1758 = vmul.f32 %v1729, 1.442695
      %v1759 = vpow.pop %v1758
      %v1760 = vmul.f32 %v1730, 1.442695
      %v1761 = vpow.pop %v1760
      %v1762 = vmul.f32 %v1731, 1.442695
      %v1763 = vpow.pop %v1762
      %v1764 = vmul.f32 %v1732, 1.442695
      %v1765 = vpow.pop %v1764
      %v1766 = vmul.f32 %v1733, 1.442695
      %v1767 = vpow.pop %v1766
      %v1768 = vmul.f32 %v1734, 1.442695
      %v1769 = vpow.pop %v1768
      %v1770 = vmul.f32 %v1735, 1.442695
      %v1771 = vpow.pop %v1770
      %v1772 = vmul.f32 %v1736, 1.442695
      %v1773 = vpow.pop %v1772
      %v1774 = vmul.f32 %v1737, 1.442695
      %v1775 = vpow.pop %v1774
      %v1776 = vmul.f32 %v1738, 1.442695
      %v1777 = vpow.pop %v1776
      %v1778 = vmul.f32 %v1739, 1.442695
      %v1779 = vpow.pop %v1778
      %v1780 = vadd.f32 %v1741, 1.0
      %v1781 = vadd.f32 %v1743, 1.0
      %v1782 = vadd.f32 %v1745, 1.0
      %v1783 = vadd.f32 %v1747, 1.0
      %v1784 = vadd.f32 %v1749, 1.0
      %v1785 = vadd.f32 %v1751, 1.0
      %v1786 = vadd.f32 %v1753, 1.0
      %v1787 = vadd.f32 %v1755, 1.0
      %v1788 = vadd.f32 %v1757, 1.0
      %v1789 = vadd.f32 %v1759, 1.0
      %v1790 = vadd.f32 %v1761, 1.0
      %v1791 = vadd.f32 %v1763, 1.0
      %v1792 = vadd.f32 %v1765, 1.0
      %v1793 = vadd.f32 %v1767, 1.0
      %v1794 = vadd.f32 %v1769, 1.0
      %v1795 = vadd.f32 %v1771, 1.0
      %v1796 = vadd.f32 %v1773, 1.0
      %v1797 = vadd.f32 %v1775, 1.0
      %v1798 = vadd.f32 %v1777, 1.0
      %v1799 = vadd.f32 %v1779, 1.0
      %v1800 = vrcp.pop %v1780
      %v1801 = vmul.f32 %v1780, %v1800
      %v1802 = vsub.f32 1.0, %v1801
      %v1803 = vmul.f32 %v1800, %v1802
      %v1804 = vadd.f32 %v1800, %v1803
      %vm1805 = vweird.f32 %v1780
      %vm1806 = vweird.f32 %v1800
      %vm1807 = vmor %vm1805, %vm1806
      %v1808 = vsel %vm1807, %v1800, %v1804
      %v1809 = vand.u32 2147483647, %v1780
      %vm1810 = vcmp.eq.f32.partialorder %v1809, 8.507059e+37
      %v1811 = vand.u32 %v1780, 2147483648
      %v1812 = vor.u32 1.1754944e-38, %v1811
      %v1813 = vsel %vm1810, %v1812, %v1808
      %v1814 = vmul.f32 1.0, %v1813
      %v1815 = vrcp.pop %v1781
      %v1816 = vmul.f32 %v1781, %v1815
      %v1817 = vsub.f32 1.0, %v1816
      %v1818 = vmul.f32 %v1815, %v1817
      %v1819 = vadd.f32 %v1815, %v1818
      %vm1820 = vweird.f32 %v1781
      %vm1821 = vweird.f32 %v1815
      %vm1822 = vmor %vm1820, %vm1821
      %v1823 = vsel %vm1822, %v1815, %v1819
      %v1824 = vand.u32 2147483647, %v1781
      %vm1825 = vcmp.eq.f32.partialorder %v1824, 8.507059e+37
      %v1826 = vand.u32 %v1781, 2147483648
      %v1827 = vor.u32 1.1754944e-38, %v1826
      %v1828 = vsel %vm1825, %v1827, %v1823
      %v1829 = vmul.f32 1.0, %v1828
      %v1830 = vrcp.pop %v1782
      %v1831 = vmul.f32 %v1782, %v1830
      %v1832 = vsub.f32 1.0, %v1831
      %v1833 = vmul.f32 %v1830, %v1832
      %v1834 = vadd.f32 %v1830, %v1833
      %vm1835 = vweird.f32 %v1782
      %vm1836 = vweird.f32 %v1830
      %vm1837 = vmor %vm1835, %vm1836
      %v1838 = vsel %vm1837, %v1830, %v1834
      %v1839 = vand.u32 2147483647, %v1782
      %vm1840 = vcmp.eq.f32.partialorder %v1839, 8.507059e+37
      %v1841 = vand.u32 %v1782, 2147483648
      %v1842 = vor.u32 1.1754944e-38, %v1841
      %v1843 = vsel %vm1840, %v1842, %v1838
      %v1844 = vmul.f32 1.0, %v1843
      %v1845 = vrcp.pop %v1783
      %v1846 = vmul.f32 %v1783, %v1845
      %v1847 = vsub.f32 1.0, %v1846
      %v1848 = vmul.f32 %v1845, %v1847
      %v1849 = vadd.f32 %v1845, %v1848
      %vm1850 = vweird.f32 %v1783
      %vm1851 = vweird.f32 %v1845
      %vm1852 = vmor %vm1850, %vm1851
      %v1853 = vsel %vm1852, %v1845, %v1849
      %v1854 = vand.u32 2147483647, %v1783
      %vm1855 = vcmp.eq.f32.partialorder %v1854, 8.507059e+37
      %v1856 = vand.u32 %v1783, 2147483648
      %v1857 = vor.u32 1.1754944e-38, %v1856
      %v1858 = vsel %vm1855, %v1857, %v1853
      %v1859 = vmul.f32 1.0, %v1858
      %v1860 = vrcp.pop %v1784
      %v1861 = vmul.f32 %v1784, %v1860
      %v1862 = vsub.f32 1.0, %v1861
      %v1863 = vmul.f32 %v1860, %v1862
      %v1864 = vadd.f32 %v1860, %v1863
      %vm1865 = vweird.f32 %v1784
      %vm1866 = vweird.f32 %v1860
      %vm1867 = vmor %vm1865, %vm1866
      %v1868 = vsel %vm1867, %v1860, %v1864
      %v1869 = vand.u32 2147483647, %v1784
      %vm1870 = vcmp.eq.f32.partialorder %v1869, 8.507059e+37
      %v1871 = vand.u32 %v1784, 2147483648
      %v1872 = vor.u32 1.1754944e-38, %v1871
      %v1873 = vsel %vm1870, %v1872, %v1868
      %v1874 = vmul.f32 1.0, %v1873
      %v1875 = vrcp.pop %v1785
      %v1876 = vmul.f32 %v1785, %v1875
      %v1877 = vsub.f32 1.0, %v1876
      %v1878 = vmul.f32 %v1875, %v1877
      %v1879 = vadd.f32 %v1875, %v1878
      %vm1880 = vweird.f32 %v1785
      %vm1881 = vweird.f32 %v1875
      %vm1882 = vmor %vm1880, %vm1881
      %v1883 = vsel %vm1882, %v1875, %v1879
      %v1884 = vand.u32 2147483647, %v1785
      %vm1885 = vcmp.eq.f32.partialorder %v1884, 8.507059e+37
      %v1886 = vand.u32 %v1785, 2147483648
      %v1887 = vor.u32 1.1754944e-38, %v1886
      %v1888 = vsel %vm1885, %v1887, %v1883
      %v1889 = vmul.f32 1.0, %v1888
      %v1890 = vrcp.pop %v1786
      %v1891 = vmul.f32 %v1786, %v1890
      %v1892 = vsub.f32 1.0, %v1891
      %v1893 = vmul.f32 %v1890, %v1892
      %v1894 = vadd.f32 %v1890, %v1893
      %vm1895 = vweird.f32 %v1786
      %vm1896 = vweird.f32 %v1890
      %vm1897 = vmor %vm1895, %vm1896
      %v1898 = vsel %vm1897, %v1890, %v1894
      %v1899 = vand.u32 2147483647, %v1786
      %vm1900 = vcmp.eq.f32.partialorder %v1899, 8.507059e+37
      %v1901 = vand.u32 %v1786, 2147483648
      %v1902 = vor.u32 1.1754944e-38, %v1901
      %v1903 = vsel %vm1900, %v1902, %v1898
      %v1904 = vmul.f32 1.0, %v1903
      %v1905 = vrcp.pop %v1787
      %v1906 = vmul.f32 %v1787, %v1905
      %v1907 = vsub.f32 1.0, %v1906
      %v1908 = vmul.f32 %v1905, %v1907
      %v1909 = vadd.f32 %v1905, %v1908
      %vm1910 = vweird.f32 %v1787
      %vm1911 = vweird.f32 %v1905
      %vm1912 = vmor %vm1910, %vm1911
      %v1913 = vsel %vm1912, %v1905, %v1909
      %v1914 = vand.u32 2147483647, %v1787
      %vm1915 = vcmp.eq.f32.partialorder %v1914, 8.507059e+37
      %v1916 = vand.u32 %v1787, 2147483648
      %v1917 = vor.u32 1.1754944e-38, %v1916
      %v1918 = vsel %vm1915, %v1917, %v1913
      %v1919 = vmul.f32 1.0, %v1918
      %v1920 = vrcp.pop %v1788
      %v1921 = vmul.f32 %v1788, %v1920
      %v1922 = vsub.f32 1.0, %v1921
      %v1923 = vmul.f32 %v1920, %v1922
      %v1924 = vadd.f32 %v1920, %v1923
      %vm1925 = vweird.f32 %v1788
      %vm1926 = vweird.f32 %v1920
      %vm1927 = vmor %vm1925, %vm1926
      %v1928 = vsel %vm1927, %v1920, %v1924
      %v1929 = vand.u32 2147483647, %v1788
      %vm1930 = vcmp.eq.f32.partialorder %v1929, 8.507059e+37
      %v1931 = vand.u32 %v1788, 2147483648
      %v1932 = vor.u32 1.1754944e-38, %v1931
      %v1933 = vsel %vm1930, %v1932, %v1928
      %v1934 = vmul.f32 1.0, %v1933
      %v1935 = vrcp.pop %v1789
      %v1936 = vmul.f32 %v1789, %v1935
      %v1937 = vsub.f32 1.0, %v1936
      %v1938 = vmul.f32 %v1935, %v1937
      %v1939 = vadd.f32 %v1935, %v1938
      %vm1940 = vweird.f32 %v1789
      %vm1941 = vweird.f32 %v1935
      %vm1942 = vmor %vm1940, %vm1941
      %v1943 = vsel %vm1942, %v1935, %v1939
      %v1944 = vand.u32 2147483647, %v1789
      %vm1945 = vcmp.eq.f32.partialorder %v1944, 8.507059e+37
      %v1946 = vand.u32 %v1789, 2147483648
      %v1947 = vor.u32 1.1754944e-38, %v1946
      %v1948 = vsel %vm1945, %v1947, %v1943
      %v1949 = vmul.f32 1.0, %v1948
      %v1950 = vrcp.pop %v1790
      %v1951 = vmul.f32 %v1790, %v1950
      %v1952 = vsub.f32 1.0, %v1951
      %v1953 = vmul.f32 %v1950, %v1952
      %v1954 = vadd.f32 %v1950, %v1953
      %vm1955 = vweird.f32 %v1790
      %vm1956 = vweird.f32 %v1950
      %vm1957 = vmor %vm1955, %vm1956
      %v1958 = vsel %vm1957, %v1950, %v1954
      %v1959 = vand.u32 2147483647, %v1790
      %vm1960 = vcmp.eq.f32.partialorder %v1959, 8.507059e+37
      %v1961 = vand.u32 %v1790, 2147483648
      %v1962 = vor.u32 1.1754944e-38, %v1961
      %v1963 = vsel %vm1960, %v1962, %v1958
      %v1964 = vmul.f32 1.0, %v1963
      %v1965 = vrcp.pop %v1791
      %v1966 = vmul.f32 %v1791, %v1965
      %v1967 = vsub.f32 1.0, %v1966
      %v1968 = vmul.f32 %v1965, %v1967
      %v1969 = vadd.f32 %v1965, %v1968
      %vm1970 = vweird.f32 %v1791
      %vm1971 = vweird.f32 %v1965
      %vm1972 = vmor %vm1970, %vm1971
      %v1973 = vsel %vm1972, %v1965, %v1969
      %v1974 = vand.u32 2147483647, %v1791
      %vm1975 = vcmp.eq.f32.partialorder %v1974, 8.507059e+37
      %v1976 = vand.u32 %v1791, 2147483648
      %v1977 = vor.u32 1.1754944e-38, %v1976
      %v1978 = vsel %vm1975, %v1977, %v1973
      %v1979 = vmul.f32 1.0, %v1978
      %v1980 = vrcp.pop %v1792
      %v1981 = vmul.f32 %v1792, %v1980
      %v1982 = vsub.f32 1.0, %v1981
      %v1983 = vmul.f32 %v1980, %v1982
      %v1984 = vadd.f32 %v1980, %v1983
      %vm1985 = vweird.f32 %v1792
      %vm1986 = vweird.f32 %v1980
      %vm1987 = vmor %vm1985, %vm1986
      %v1988 = vsel %vm1987, %v1980, %v1984
      %v1989 = vand.u32 2147483647, %v1792
      %vm1990 = vcmp.eq.f32.partialorder %v1989, 8.507059e+37
      %v1991 = vand.u32 %v1792, 2147483648
      %v1992 = vor.u32 1.1754944e-38, %v1991
      %v1993 = vsel %vm1990, %v1992, %v1988
      %v1994 = vmul.f32 1.0, %v1993
      %v1995 = vrcp.pop %v1793
      %v1996 = vmul.f32 %v1793, %v1995
      %v1997 = vsub.f32 1.0, %v1996
      %v1998 = vmul.f32 %v1995, %v1997
      %v1999 = vadd.f32 %v1995, %v1998
      %vm2000 = vweird.f32 %v1793
      %vm2001 = vweird.f32 %v1995
      %vm2002 = vmor %vm2000, %vm2001
      %v2003 = vsel %vm2002, %v1995, %v1999
      %v2004 = vand.u32 2147483647, %v1793
      %vm2005 = vcmp.eq.f32.partialorder %v2004, 8.507059e+37
      %v2006 = vand.u32 %v1793, 2147483648
      %v2007 = vor.u32 1.1754944e-38, %v2006
      %v2008 = vsel %vm2005, %v2007, %v2003
      %v2009 = vmul.f32 1.0, %v2008
      %v2010 = vrcp.pop %v1794
      %v2011 = vmul.f32 %v1794, %v2010
      %v2012 = vsub.f32 1.0, %v2011
      %v2013 = vmul.f32 %v2010, %v2012
      %v2014 = vadd.f32 %v2010, %v2013
      %vm2015 = vweird.f32 %v1794
      %vm2016 = vweird.f32 %v2010
      %vm2017 = vmor %vm2015, %vm2016
      %v2018 = vsel %vm2017, %v2010, %v2014
      %v2019 = vand.u32 2147483647, %v1794
      %vm2020 = vcmp.eq.f32.partialorder %v2019, 8.507059e+37
      %v2021 = vand.u32 %v1794, 2147483648
      %v2022 = vor.u32 1.1754944e-38, %v2021
      %v2023 = vsel %vm2020, %v2022, %v2018
      %v2024 = vmul.f32 1.0, %v2023
      %v2025 = vrcp.pop %v1795
      %v2026 = vmul.f32 %v1795, %v2025
      %v2027 = vsub.f32 1.0, %v2026
      %v2028 = vmul.f32 %v2025, %v2027
      %v2029 = vadd.f32 %v2025, %v2028
      %vm2030 = vweird.f32 %v1795
      %vm2031 = vweird.f32 %v2025
      %vm2032 = vmor %vm2030, %vm2031
      %v2033 = vsel %vm2032, %v2025, %v2029
      %v2034 = vand.u32 2147483647, %v1795
      %vm2035 = vcmp.eq.f32.partialorder %v2034, 8.507059e+37
      %v2036 = vand.u32 %v1795, 2147483648
      %v2037 = vor.u32 1.1754944e-38, %v2036
      %v2038 = vsel %vm2035, %v2037, %v2033
      %v2039 = vmul.f32 1.0, %v2038
      %v2040 = vrcp.pop %v1796
      %v2041 = vmul.f32 %v1796, %v2040
      %v2042 = vsub.f32 1.0, %v2041
      %v2043 = vmul.f32 %v2040, %v2042
      %v2044 = vadd.f32 %v2040, %v2043
      %vm2045 = vweird.f32 %v1796
      %vm2046 = vweird.f32 %v2040
      %vm2047 = vmor %vm2045, %vm2046
      %v2048 = vsel %vm2047, %v2040, %v2044
      %v2049 = vand.u32 2147483647, %v1796
      %vm2050 = vcmp.eq.f32.partialorder %v2049, 8.507059e+37
      %v2051 = vand.u32 %v1796, 2147483648
      %v2052 = vor.u32 1.1754944e-38, %v2051
      %v2053 = vsel %vm2050, %v2052, %v2048
      %v2054 = vmul.f32 1.0, %v2053
      %v2055 = vrcp.pop %v1797
      %v2056 = vmul.f32 %v1797, %v2055
      %v2057 = vsub.f32 1.0, %v2056
      %v2058 = vmul.f32 %v2055, %v2057
      %v2059 = vadd.f32 %v2055, %v2058
      %vm2060 = vweird.f32 %v1797
      %vm2061 = vweird.f32 %v2055
      %vm2062 = vmor %vm2060, %vm2061
      %v2063 = vsel %vm2062, %v2055, %v2059
      %v2064 = vand.u32 2147483647, %v1797
      %vm2065 = vcmp.eq.f32.partialorder %v2064, 8.507059e+37
      %v2066 = vand.u32 %v1797, 2147483648
      %v2067 = vor.u32 1.1754944e-38, %v2066
      %v2068 = vsel %vm2065, %v2067, %v2063
      %v2069 = vmul.f32 1.0, %v2068
      %v2070 = vrcp.pop %v1798
      %v2071 = vmul.f32 %v1798, %v2070
      %v2072 = vsub.f32 1.0, %v2071
      %v2073 = vmul.f32 %v2070, %v2072
      %v2074 = vadd.f32 %v2070, %v2073
      %vm2075 = vweird.f32 %v1798
      %vm2076 = vweird.f32 %v2070
      %vm2077 = vmor %vm2075, %vm2076
      %v2078 = vsel %vm2077, %v2070, %v2074
      %v2079 = vand.u32 2147483647, %v1798
      %vm2080 = vcmp.eq.f32.partialorder %v2079, 8.507059e+37
      %v2081 = vand.u32 %v1798, 2147483648
      %v2082 = vor.u32 1.1754944e-38, %v2081
      %v2083 = vsel %vm2080, %v2082, %v2078
      %v2084 = vmul.f32 1.0, %v2083
      %v2085 = vrcp.pop %v1799
      %v2086 = vmul.f32 %v1799, %v2085
      %v2087 = vsub.f32 1.0, %v2086
      %v2088 = vmul.f32 %v2085, %v2087
      %v2089 = vadd.f32 %v2085, %v2088
      %vm2090 = vweird.f32 %v1799
      %vm2091 = vweird.f32 %v2085
      %vm2092 = vmor %vm2090, %vm2091
      %v2093 = vsel %vm2092, %v2085, %v2089
      %v2094 = vand.u32 2147483647, %v1799
      %vm2095 = vcmp.eq.f32.partialorder %v2094, 8.507059e+37
      %v2096 = vand.u32 %v1799, 2147483648
      %v2097 = vor.u32 1.1754944e-38, %v2096
      %v2098 = vsel %vm2095, %v2097, %v2093
      %v2099 = vmul.f32 1.0, %v2098
      %v2100 = vmul.f32 %v1700, %v1814
      %v2101 = vmul.f32 %v1701, %v1829
      %v2102 = vmul.f32 %v1702, %v1844
      %v2103 = vmul.f32 %v1703, %v1859
      %v2104 = vmul.f32 %v1704, %v1874
      %v2105 = vmul.f32 %v1705, %v1889
      %v2106 = vmul.f32 %v1706, %v1904
      %v2107 = vmul.f32 %v1707, %v1919
      %v2108 = vmul.f32 %v1708, %v1934
      %v2109 = vmul.f32 %v1709, %v1949
      %v2110 = vmul.f32 %v1710, %v1964
      %v2111 = vmul.f32 %v1711, %v1979
      %v2112 = vmul.f32 %v1712, %v1994
      %v2113 = vmul.f32 %v1713, %v2009
      %v2114 = vmul.f32 %v1714, %v2024
      %v2115 = vmul.f32 %v1715, %v2039
      %v2116 = vmul.f32 %v1716, %v2054
      %v2117 = vmul.f32 %v1717, %v2069
      %v2118 = vmul.f32 %v1718, %v2084
      %v2119 = vmul.f32 %v1719, %v2099
      %2120 = vst [vmem:[%s271] sm:$0xff] %v2100
      %2121 = vst [vmem:[%s271 + $0x8] sm:$0xff] %v2101
      %2122 = vst [vmem:[%s271 + $0x10] sm:$0xff] %v2102
      %2123 = vst [vmem:[%s271 + $0x18] sm:$0xff] %v2103
      %2124 = vst [vmem:[%s271 + $0x20] sm:$0xff] %v2104
      %2125 = vst [vmem:[%s271 + $0x28] sm:$0xff] %v2105
      %2126 = vst [vmem:[%s271 + $0x30] sm:$0xff] %v2106
      %2127 = vst [vmem:[%s271 + $0x38] sm:$0xff] %v2107
      %2128 = vst [vmem:[%s271 + $0x40] sm:$0xff] %v2108
      %2129 = vst [vmem:[%s271 + $0x48] sm:$0xff] %v2109
      %2130 = vst [vmem:[%s271 + $0x50] sm:$0xff] %v2110
      %2131 = vst [vmem:[%s271 + $0x58] sm:$0xff] %v2111
      %2132 = vst [vmem:[%s271 + $0x60] sm:$0xff] %v2112
      %2133 = vst [vmem:[%s271 + $0x68] sm:$0xff] %v2113
      %2134 = vst [vmem:[%s271 + $0x70] sm:$0xff] %v2114
      %2135 = vst [vmem:[%s271 + $0x78] sm:$0xff] %v2115
      %2136 = vst [vmem:[%s271 + $0x80] sm:$0xff] %v2116
      %2137 = vst [vmem:[%s271 + $0x88] sm:$0xff] %v2117
      %2138 = vst [vmem:[%s271 + $0x90] sm:$0xff] %v2118
      %2139 = vst [vmem:[%s271 + $0x98] sm:$0xff] %v2119
      %p2140 = scmp.lt.s32.totalorder %s19, 1
      %s2141 = scalar_select %p2140, %s19, 1
      %p2142 = scmp.lt.s32.totalorder %s20, 1
      %s2143 = scalar_select %p2142, %s20, 1
      %p2144 = scmp.lt.s32.totalorder %s21, 0
      %s2145 = scalar_select %p2144, %s21, 0
      %s2146 = smul.addr %s2145, 20
      %s2147 = smul.addr %s2143, 20
      %s2148 = sadd.s32 %s2146, %s2147
      %s2149 = smul.addr %s2141, 40
      %s2150 = sadd.s32 %s2148, %s2149
      %s2151 = smul.addr %s2150, 8
      %s2152 = scalar_lea.vmem %s3, %s2151
      // Predicated region
      $region33: #{focus_h.1} parent=31 // pred_check
        %p2153 = pneg %p137
      $region34: #{focus_h.1} parent=31 // pred_check_branch
        %2155 = sbr.rel (%p2153) target = $region36
      $region35: #{focus_h.1} parent=31 // pred_region
        _
      $region36: #{focus_h.1} parent=31 // pred_fallthru
        _
    $region32: #{focus_h.1} parent=5 // pred_fallthru
      _
    %p2156 = scmp.le.s32.totalorder 2, %s9
    // Predicated region
    $region37: #{focus_h.1} parent=5 // pred_check
      %p2157 = pneg %p2156
    $region38: #{focus_h.1} parent=5 // pred_check_branch
      %2159 = sbr.rel (%p2157) target = $region40
    $region39: #{focus_h.1} parent=5 // pred_region
      %s2160 = ssub.s32 %s9, 2
      // Predicated region
      $region41: #{focus_h.1} parent=39 // pred_check
        %p2161 = pneg %p143
      $region42: #{focus_h.1} parent=39 // pred_check_branch
        %2163 = sbr.rel (%p2161) target = $region44
      $region43: #{focus_h.1} parent=39 // pred_region
        %p2164 = scmp.lt.s32.totalorder %s22, 1
        %s2165 = scalar_select %p2164, %s22, 1
        %p2166 = scmp.lt.s32.totalorder %s23, 1
        %s2167 = scalar_select %p2166, %s23, 1
        %p2168 = scmp.lt.s32.totalorder %s24, 0
        %s2169 = scalar_select %p2168, %s24, 0
        %s2170 = smul.addr %s2169, 20
        %s2171 = smul.addr %s2167, 20
        %s2172 = sadd.s32 %s2170, %s2171
        %s2173 = smul.addr %s2165, 40
        %s2174 = sadd.s32 %s2172, %s2173
        %s2175 = smul.addr %s2174, 8
        %s2176 = scalar_lea.vmem %s3, %s2175
      $region44: #{focus_h.1} parent=39 // pred_fallthru
        _
    $region40: #{focus_h.1} parent=5 // pred_fallthru
      _
  $region6: #{focus_h.1} parent=0 // loop_footer
    %s13 = sadd.s32 1, %s9
  $region7: #{focus_h.1} parent=0 // loop_footer_branch
    %8 = sbr.rel target = $region3
  $region8: #{focus_h.1} parent=0 // loop_exit
    _

</llo_original>
